<compile_context>
chip_gen: v7x
topology: tpu7x:2x2x1
jax: 0.10.0
libtpu: 0.0.40
codegen_flags: <defaults>
</compile_context>

<pallas_src>
import jax
import jax.numpy as jnp
from jax.experimental import pallas as pl
from jax.experimental.pallas import tpu as pltpu


def _effnet_head_kernel(x_ref, pool_ref, wh_ref, fcw_ref, fcb_ref, o_ref):
    # x_ref   : (TB*HW, Cin) bf16   flattened activations for this batch tile
    # pool_ref: (TB, TB*HW)  bf16   block-diagonal ones (avg-pool as an MXU matmul)
    # wh_ref  : (Cin, F)     bf16   1x1 conv_head weight (extract_features stand-in)
    # fcw_ref : (F, NCp)     bf16   fc weight (in, out), pre-scaled by 1/HW, lane-padded
    # fcb_ref : (1, NCp)     f32    fc bias, lane-padded with zeros
    # o_ref   : (TB, NCp)    f32    logits for this batch tile
    feat = jnp.dot(x_ref[...], wh_ref[...],
                   preferred_element_type=jnp.float32)            # (TB*HW, F) f32

    # swish (SiLU): exp on the EUP + approx reciprocal (also EUP slot), f32 math.
    sig = pl.reciprocal(1.0 + jnp.exp(-feat), approx=True)
    feat = (feat * sig).astype(jnp.bfloat16)                      # (TB*HW, F) bf16

    # AdaptiveAvgPool2d(1) as a matmul against block-diagonal ones; the 1/HW
    # scale was folded into fcw by the wrapper.
    pooled = jnp.dot(pool_ref[...], feat,
                     preferred_element_type=jnp.float32)          # (TB, F) f32

    # Dropout(0.5) -> identity at inference.
    # Linear(feature, num_classes) on the MXU in bf16, f32 accumulation + bias.
    logits = jnp.dot(pooled.astype(fcw_ref.dtype), fcw_ref[...],
                     preferred_element_type=jnp.float32) + fcb_ref[...]
    o_ref[...] = logits.astype(o_ref.dtype)


def _tpu_budget():
    """Per-generation (vmem_limit_bytes, batch_tile_cap, prefer_two_grid_steps)."""
    try:
        cap = pltpu.get_tpu_info().vmem_capacity_bytes
    except Exception:                       # query unavailable -> conservative defaults
        return 32 * 1024 * 1024, 16, True
    if cap >= 96 * 1024 * 1024:             # v5e / v6e: 128 MiB VMEM, single TensorCore
        return 64 * 1024 * 1024, 64, False
    return 32 * 1024 * 1024, 16, True       # v7x: 64 MiB per TC, 2 TCs/chip


def _pick_batch_tile(batch, tb_cap, prefer_two_steps):
    # TB is either a multiple of 8 (sublane-aligned blocks) or the full batch
    # (block == full array, always legal).
    tb = None
    for cand in (64, 32, 16, 8):
        if cand <= tb_cap and batch % cand == 0:
            tb = cand
            break
    if tb is None:
        return batch
    if prefer_two_steps and batch // tb < 2 and tb >= 16 and batch % (tb // 2) == 0:
        tb //= 2                            # v7x: keep both TensorCores busy
    return tb


def efficinet_net_forward(x_nchw, w_head, fc_w, fc_b, *, batch_tile=None):
    """x_nchw: (B, Cin, H, W) f32 (PyTorch NCHW at the API).
    w_head : (F, Cin)   1x1 conv_head weight (out, in)
    fc_w   : (NC, F)    torch Linear weight (out, in)
    fc_b   : (NC,)
    returns: (B, NC) f32 logits
    """
    B, Cin, H, W = x_nchw.shape
    F = w_head.shape[0]
    NC = fc_w.shape[0]
    HW = H * W

    vmem_limit, tb_cap, two_steps = _tpu_budget()
    TB = batch_tile if batch_tile is not None else _pick_batch_tile(B, tb_cap, two_steps)
    assert B % TB == 0, "batch tile must divide batch"
    NCp = pl.cdiv(NC, 128) * 128            # lane-dense output width

    # NCHW -> (B*HW, Cin) flat activations (reshape hoisted out of the kernel).
    # TODO(synk): a real backbone should emit NHWC directly so this transpose
    # (one extra HBM pass over the largest tensor) disappears.
    x = jnp.transpose(x_nchw, (0, 2, 3, 1)).reshape(B * HW, Cin).astype(jnp.bfloat16)
    wh = jnp.transpose(w_head, (1, 0)).astype(jnp.bfloat16)                    # (Cin, F)
    # Fold 1/HW of AdaptiveAvgPool2d(1) into the fc weight; pad NC -> NCp with zeros.
    fcw = jnp.zeros((F, NCp), jnp.bfloat16).at[:, :NC].set(
        (jnp.transpose(fc_w, (1, 0)) * (1.0 / HW)).astype(jnp.bfloat16))       # (F, NCp)
    fcb = jnp.zeros((1, NCp), jnp.float32).at[0, :NC].set(fc_b.astype(jnp.float32))
    # Block-diagonal ones: pool[i, j] = 1  iff  j // HW == i.
    pool = (jnp.arange(TB)[:, None] == (jnp.arange(TB * HW)[None, :] // HW)
            ).astype(jnp.bfloat16)                                             # (TB, TB*HW)

    cost = pl.CostEstimate(
        flops=2 * B * HW * Cin * F + 2 * B * TB * HW * F + 2 * B * F * NCp,
        transcendentals=B * HW * F,
        bytes_accessed=(B * HW * Cin * 2 + TB * TB * HW * 2 + Cin * F * 2
                        + F * NCp * 2 + NCp * 4 + B * NCp * 4),
    )

    def _call(weight_mode):
        def _wspec(shape):
            if weight_mode is None:
                return pl.BlockSpec(shape, lambda b: (0, 0))
            return pl.BlockSpec(shape, lambda b: (0, 0), pipeline_mode=weight_mode)

        return pl.pallas_call(
            _effnet_head_kernel,
            out_shape=jax.ShapeDtypeStruct((B, NCp), jnp.float32),
            grid_spec=pltpu.PrefetchScalarGridSpec(
                num_scalar_prefetch=0,
                grid=(B // TB,),
                in_specs=[
                    pl.BlockSpec((TB * HW, Cin), lambda b: (b, 0)),
                    _wspec((TB, TB * HW)),
                    _wspec((Cin, F)),
                    _wspec((F, NCp)),
                    _wspec((1, NCp)),
                ],
                out_specs=pl.BlockSpec((TB, NCp), lambda b: (b, 0)),
            ),
            compiler_params=pltpu.CompilerParams(
                dimension_semantics=("parallel",),
                vmem_limit_bytes=vmem_limit,
            ),
            cost_estimate=cost,
        )(x, pool, wh, fcw, fcb)

    try:
        # Single-buffer the grid-invariant inputs (their index_map is constant).
        logits = jax.block_until_ready(_call(pl.Buffered(1)))
    except Exception:
        # Fallback: default double-buffering (costs a few MiB of VMEM, still correct).
        logits = _call(None)

    return logits[:, :NC]


def _reference(x_nchw, w_head, fc_w, fc_b):
    # Pure-JAX f32 reference with the same semantics.
    B, Cin, H, W = x_nchw.shape
    x = jnp.transpose(x_nchw, (0, 2, 3, 1)).reshape(B, H * W, Cin)
    feat = jnp.einsum("bsc,fc->bsf", x, w_head)
    feat = feat * jax.nn.sigmoid(feat)
    pooled = jnp.mean(feat, axis=1)                      # (B, F)
    return pooled @ fc_w.T + fc_b


if __name__ == "__main__":
    # Small, module-consistent shapes: batch=2, in-channels=4, spatial=16x16,
    # feature=32 (stands in for 1280), num_classes=8 (stands in for 1000).
    B, Cin, H, W = 2, 4, 16, 16
    FEATURE, NUM_CLASSES = 32, 8

    key = jax.random.PRNGKey(0)
    k_x, k_wh, k_fw, k_fb = jax.random.split(key, 4)

    x = jax.random.normal(k_x, (B, Cin, H, W), dtype=jnp.float32)
    w_head = jax.random.normal(k_wh, (FEATURE, Cin), dtype=jnp.float32) * 0.1
    fc_w = jax.random.normal(k_fw, (NUM_CLASSES, FEATURE), dtype=jnp.float32) * 0.1
    fc_b = jax.random.normal(k_fb, (NUM_CLASSES,), dtype=jnp.float32) * 0.1

    out = efficinet_net_forward(x, w_head, fc_w, fc_b)
    out = jax.block_until_ready(out)

    ref = _reference(x, w_head, fc_w, fc_b)
    assert out.shape == (B, NUM_CLASSES)
    # bf16 matmul path vs f32 reference -> loosened tolerance.
    assert jnp.allclose(out, ref, atol=2e-2, rtol=2e-2), "mismatch vs reference"

    print("KERNEL_OK")
</pallas_src>

<mosaic_0001>
module attributes {stable_mosaic.version = 11 : i64} {
  func.func @_effnet_head_kernel(%arg0: i32, %arg1: memref<512x4xbf16, #tpu.memory_space<vmem>>, %arg2: memref<2x512xbf16, #tpu.memory_space<vmem>>, %arg3: memref<4x32xbf16, #tpu.memory_space<vmem>>, %arg4: memref<32x128xbf16, #tpu.memory_space<vmem>>, %arg5: memref<1x128xf32, #tpu.memory_space<vmem>>, %arg6: memref<2x128xf32, #tpu.memory_space<vmem>>) attributes {dimension_semantics = [#tpu.dimension_semantics<parallel>], iteration_bounds = array<i64: 1>, scalar_prefetch = 0 : i64, scratch_operands = 0 : i64, tpu.core_type = #tpu.core_type<tc>, window_params = [{transform_indices = @transform_0, window_bounds = array<i64: 512, 4>}, {pipeline_mode = #tpu.pipeline_mode<synchronous>, transform_indices = @transform_1, window_bounds = array<i64: 2, 512>}, {pipeline_mode = #tpu.pipeline_mode<synchronous>, transform_indices = @transform_2, window_bounds = array<i64: 4, 32>}, {pipeline_mode = #tpu.pipeline_mode<synchronous>, transform_indices = @transform_3, window_bounds = array<i64: 32, 128>}, {pipeline_mode = #tpu.pipeline_mode<synchronous>, transform_indices = @transform_4, window_bounds = array<i64: 1, 128>}, {transform_indices = @transform_5, window_bounds = array<i64: 2, 128>}]} {
    %c0 = arith.constant 0 : index
    %c0_0 = arith.constant 0 : index
    %0 = vector.load %arg1[%c0, %c0_0] : memref<512x4xbf16, #tpu.memory_space<vmem>>, vector<512x4xbf16>
    %c0_1 = arith.constant 0 : index
    %c0_2 = arith.constant 0 : index
    %1 = vector.load %arg3[%c0_1, %c0_2] : memref<4x32xbf16, #tpu.memory_space<vmem>>, vector<4x32xbf16>
    %cst = arith.constant dense<0.000000e+00> : vector<512x32xf32>
    %2 = tpu.matmul %0, %1, %cst {dimension_numbers = #tpu.dot_dimension_numbers<[1], [0], [0], [1], [0, 0, 1, 1], [], []>} : vector<512x4xbf16>, vector<4x32xbf16>, vector<512x32xf32> -> vector<512x32xf32>
    %cst_3 = arith.constant 0.000000e+00 : f32
    %3 = vector.broadcast %cst_3 : f32 to vector<512x32xf32>
    %4 = arith.subf %3, %2 : vector<512x32xf32>
    %5 = math.exp %4 : vector<512x32xf32>
    %cst_4 = arith.constant 1.000000e+00 : f32
    %6 = vector.broadcast %cst_4 : f32 to vector<512x32xf32>
    %7 = arith.addf %6, %5 : vector<512x32xf32>
    %8 = tpu.reciprocal %7 {approx = true} : vector<512x32xf32> -> vector<512x32xf32>
    %9 = arith.mulf %2, %8 : vector<512x32xf32>
    %10 = arith.truncf %9 : vector<512x32xf32> to vector<512x32xbf16>
    %c0_5 = arith.constant 0 : index
    %c0_6 = arith.constant 0 : index
    %11 = vector.load %arg2[%c0_5, %c0_6] : memref<2x512xbf16, #tpu.memory_space<vmem>>, vector<2x512xbf16>
    %cst_7 = arith.constant dense<0.000000e+00> : vector<2x32xf32>
    %12 = tpu.matmul %11, %10, %cst_7 {dimension_numbers = #tpu.dot_dimension_numbers<[1], [0], [0], [1], [0, 0, 1, 1], [], []>} : vector<2x512xbf16>, vector<512x32xbf16>, vector<2x32xf32> -> vector<2x32xf32>
    %13 = arith.truncf %12 : vector<2x32xf32> to vector<2x32xbf16>
    %c0_8 = arith.constant 0 : index
    %c0_9 = arith.constant 0 : index
    %14 = vector.load %arg4[%c0_8, %c0_9] : memref<32x128xbf16, #tpu.memory_space<vmem>>, vector<32x128xbf16>
    %cst_10 = arith.constant dense<0.000000e+00> : vector<2x128xf32>
    %15 = tpu.matmul %13, %14, %cst_10 {dimension_numbers = #tpu.dot_dimension_numbers<[1], [0], [0], [1], [0, 0, 1, 1], [], []>} : vector<2x32xbf16>, vector<32x128xbf16>, vector<2x128xf32> -> vector<2x128xf32>
    %c0_11 = arith.constant 0 : index
    %c0_12 = arith.constant 0 : index
    %16 = vector.load %arg5[%c0_11, %c0_12] : memref<1x128xf32, #tpu.memory_space<vmem>>, vector<1x128xf32>
    %17 = vector.broadcast %16 : vector<1x128xf32> to vector<2x128xf32>
    %18 = arith.addf %15, %17 : vector<2x128xf32>
    %c0_13 = arith.constant 0 : index
    %c0_14 = arith.constant 0 : index
    %19 = vector.load %arg6[%c0_13, %c0_14] : memref<2x128xf32, #tpu.memory_space<vmem>>, vector<2x128xf32>
    tpu.vector_store %arg6[%c0_13, %c0_14], %18 {strides = array<i32>} : memref<2x128xf32, #tpu.memory_space<vmem>>, vector<2x128xf32>,
    return
  }
  func.func @transform_0(%arg0: i32) -> (i32, i32) {
    %c0_i32 = arith.constant 0 : i32
    %c0_i32_0 = arith.constant 0 : i32
    return %arg0, %c0_i32 : i32, i32
  }
  func.func @transform_1(%arg0: i32) -> (i32, i32) {
    %c0_i32 = arith.constant 0 : i32
    %c0_i32_0 = arith.constant 0 : i32
    %c0_i32_1 = arith.constant 0 : i32
    return %c0_i32, %c0_i32_0 : i32, i32
  }
  func.func @transform_2(%arg0: i32) -> (i32, i32) {
    %c0_i32 = arith.constant 0 : i32
    %c0_i32_0 = arith.constant 0 : i32
    %c0_i32_1 = arith.constant 0 : i32
    return %c0_i32, %c0_i32_0 : i32, i32
  }
  func.func @transform_3(%arg0: i32) -> (i32, i32) {
    %c0_i32 = arith.constant 0 : i32
    %c0_i32_0 = arith.constant 0 : i32
    %c0_i32_1 = arith.constant 0 : i32
    return %c0_i32, %c0_i32_0 : i32, i32
  }
  func.func @transform_4(%arg0: i32) -> (i32, i32) {
    %c0_i32 = arith.constant 0 : i32
    %c0_i32_0 = arith.constant 0 : i32
    %c0_i32_1 = arith.constant 0 : i32
    return %c0_i32, %c0_i32_0 : i32, i32
  }
  func.func @transform_5(%arg0: i32) -> (i32, i32) {
    %c0_i32 = arith.constant 0 : i32
    %c0_i32_0 = arith.constant 0 : i32
    return %arg0, %c0_i32 : i32, i32
  }
}

module attributes {stable_mosaic.version = 11 : i64} {
  func.func @_effnet_head_kernel(%arg0: i32, %arg1: memref<512x4xbf16, #tpu.memory_space<vmem>>, %arg2: memref<2x512xbf16, #tpu.memory_space<vmem>>, %arg3: memref<4x32xbf16, #tpu.memory_space<vmem>>, %arg4: memref<32x128xbf16, #tpu.memory_space<vmem>>, %arg5: memref<1x128xf32, #tpu.memory_space<vmem>>, %arg6: memref<2x128xf32, #tpu.memory_space<vmem>>) attributes {dimension_semantics = [#tpu.dimension_semantics<parallel>], iteration_bounds = array<i64: 1>, scalar_prefetch = 0 : i64, scratch_operands = 0 : i64, tpu.core_type = #tpu.core_type<tc>, window_params = [{transform_indices = @transform_0, window_bounds = array<i64: 512, 4>}, {pipeline_mode = #tpu.pipeline_mode<synchronous>, transform_indices = @transform_1, window_bounds = array<i64: 2, 512>}, {pipeline_mode = #tpu.pipeline_mode<synchronous>, transform_indices = @transform_2, window_bounds = array<i64: 4, 32>}, {pipeline_mode = #tpu.pipeline_mode<synchronous>, transform_indices = @transform_3, window_bounds = array<i64: 32, 128>}, {pipeline_mode = #tpu.pipeline_mode<synchronous>, transform_indices = @transform_4, window_bounds = array<i64: 1, 128>}, {transform_indices = @transform_5, window_bounds = array<i64: 2, 128>}]} {
    %c0 = arith.constant 0 : index
    %c0_0 = arith.constant 0 : index
    %0 = vector.load %arg1[%c0, %c0_0] : memref<512x4xbf16, #tpu.memory_space<vmem>>, vector<512x4xbf16>
    %c0_1 = arith.constant 0 : index
    %c0_2 = arith.constant 0 : index
    %1 = vector.load %arg3[%c0_1, %c0_2] : memref<4x32xbf16, #tpu.memory_space<vmem>>, vector<4x32xbf16>
    %cst = arith.constant dense<0.000000e+00> : vector<512x32xf32>
    %2 = tpu.matmul %0, %1, %cst {dimension_numbers = #tpu.dot_dimension_numbers<[1], [0], [0], [1], [0, 0, 1, 1], [], []>} : vector<512x4xbf16>, vector<4x32xbf16>, vector<512x32xf32> -> vector<512x32xf32>
    %cst_3 = arith.constant 0.000000e+00 : f32
    %3 = vector.broadcast %cst_3 : f32 to vector<512x32xf32>
    %4 = arith.subf %3, %2 : vector<512x32xf32>
    %5 = math.exp %4 : vector<512x32xf32>
    %cst_4 = arith.constant 1.000000e+00 : f32
    %6 = vector.broadcast %cst_4 : f32 to vector<512x32xf32>
    %7 = arith.addf %6, %5 : vector<512x32xf32>
    %8 = tpu.reciprocal %7 {approx = true} : vector<512x32xf32> -> vector<512x32xf32>
    %9 = arith.mulf %2, %8 : vector<512x32xf32>
    %10 = arith.truncf %9 : vector<512x32xf32> to vector<512x32xbf16>
    %c0_5 = arith.constant 0 : index
    %c0_6 = arith.constant 0 : index
    %11 = vector.load %arg2[%c0_5, %c0_6] : memref<2x512xbf16, #tpu.memory_space<vmem>>, vector<2x512xbf16>
    %cst_7 = arith.constant dense<0.000000e+00> : vector<2x32xf32>
    %12 = tpu.matmul %11, %10, %cst_7 {dimension_numbers = #tpu.dot_dimension_numbers<[1], [0], [0], [1], [0, 0, 1, 1], [], []>} : vector<2x512xbf16>, vector<512x32xbf16>, vector<2x32xf32> -> vector<2x32xf32>
    %13 = arith.truncf %12 : vector<2x32xf32> to vector<2x32xbf16>
    %c0_8 = arith.constant 0 : index
    %c0_9 = arith.constant 0 : index
    %14 = vector.load %arg4[%c0_8, %c0_9] : memref<32x128xbf16, #tpu.memory_space<vmem>>, vector<32x128xbf16>
    %cst_10 = arith.constant dense<0.000000e+00> : vector<2x128xf32>
    %15 = tpu.matmul %13, %14, %cst_10 {dimension_numbers = #tpu.dot_dimension_numbers<[1], [0], [0], [1], [0, 0, 1, 1], [], []>} : vector<2x32xbf16>, vector<32x128xbf16>, vector<2x128xf32> -> vector<2x128xf32>
    %c0_11 = arith.constant 0 : index
    %c0_12 = arith.constant 0 : index
    %16 = vector.load %arg5[%c0_11, %c0_12] : memref<1x128xf32, #tpu.memory_space<vmem>>, vector<1x128xf32>
    %17 = vector.broadcast %16 : vector<1x128xf32> to vector<2x128xf32>
    %18 = arith.addf %15, %17 : vector<2x128xf32>
    %c0_13 = arith.constant 0 : index
    %c0_14 = arith.constant 0 : index
    %19 = vector.load %arg6[%c0_13, %c0_14] : memref<2x128xf32, #tpu.memory_space<vmem>>, vector<2x128xf32>
    tpu.vector_store %arg6[%c0_13, %c0_14], %18 {strides = array<i32>} : memref<2x128xf32, #tpu.memory_space<vmem>>, vector<2x128xf32>,
    return
  }
  func.func @transform_0(%arg0: i32) -> (i32, i32) {
    %c0_i32 = arith.constant 0 : i32
    %c0_i32_0 = arith.constant 0 : i32
    return %arg0, %c0_i32 : i32, i32
  }
  func.func @transform_1(%arg0: i32) -> (i32, i32) {
    %c0_i32 = arith.constant 0 : i32
    %c0_i32_0 = arith.constant 0 : i32
    %c0_i32_1 = arith.constant 0 : i32
    return %c0_i32, %c0_i32_0 : i32, i32
  }
  func.func @transform_2(%arg0: i32) -> (i32, i32) {
    %c0_i32 = arith.constant 0 : i32
    %c0_i32_0 = arith.constant 0 : i32
    %c0_i32_1 = arith.constant 0 : i32
    return %c0_i32, %c0_i32_0 : i32, i32
  }
  func.func @transform_3(%arg0: i32) -> (i32, i32) {
    %c0_i32 = arith.constant 0 : i32
    %c0_i32_0 = arith.constant 0 : i32
    %c0_i32_1 = arith.constant 0 : i32
    return %c0_i32, %c0_i32_0 : i32, i32
  }
  func.func @transform_4(%arg0: i32) -> (i32, i32) {
    %c0_i32 = arith.constant 0 : i32
    %c0_i32_0 = arith.constant 0 : i32
    %c0_i32_1 = arith.constant 0 : i32
    return %c0_i32, %c0_i32_0 : i32, i32
  }
  func.func @transform_5(%arg0: i32) -> (i32, i32) {
    %c0_i32 = arith.constant 0 : i32
    %c0_i32_0 = arith.constant 0 : i32
    return %arg0, %c0_i32 : i32, i32
  }
}

</mosaic_0001>

<llo_original>
// kernel: tpu_custom_call.1
$region0: #{tpu_custom_call.1}
  #allocation0 [shape = 'u32[]', space=smem, size = 0x4, offset = 0x4, fixed_abs, tag = 'smem constant byte address 0x4 - core index']
  #allocation1 [shape = 'u32[144,128]{1,0:T(1,128)}', space=vmem, size = 0x12000, scoped, tag = 'internal scratch']
  %s0 = inlined_call_operand.vmem [shape: bf16[512,4], index: 0, kind: input, shape index: {}]
  %s1 = inlined_call_operand.vmem [shape: bf16[2,512], index: 1, kind: input, shape index: {}]
  %s2 = inlined_call_operand.vmem [shape: bf16[4,32], index: 2, kind: input, shape index: {}]
  %s3 = inlined_call_operand.vmem [shape: bf16[32,128], index: 3, kind: input, shape index: {}]
  %s4 = inlined_call_operand.vmem [shape: f32[1,128], index: 4, kind: input, shape index: {}]
  %s5 = inlined_call_operand.hbm [shape: f32[2,128], index: 5, kind: output, shape index: {}]
  %s6 = sld [smem:[#allocation0]]
  $region30: #{tpu_custom_call.1} parent=0
    _
  %s8 = ssub.s32 1, %s6
  %s9 = scalar_select 0, %s8, %s6
  $region1: #{tpu_custom_call.1} parent=0
    #allocation2 [shape = 'u8[1024]{0}', space=vmem, size = 0x400, scoped, tag = 'output window, operand 0, single buffered']
    #allocation3 [shape = 's32[1]{0}', space=sflag, size = 0x4, scoped, tag = 'scoped memory for tpu_custom_call.1']
    %10 = vsyncpa [#allocation3], 0
    // Predicated region
    $region2: #{tpu_custom_call.1} parent=1 // pred_check
      _
    $region3: #{tpu_custom_call.1} parent=1 // pred_check_branch
      %12 = sbr.rel (0) target = $region5
    $region4: #{tpu_custom_call.1} parent=1 // pred_region
      _
    $region5: #{tpu_custom_call.1} parent=1 // pred_fallthru
      _
    // Predicated region
    $region6: #{tpu_custom_call.1} parent=1 // pred_check
      _
    $region7: #{tpu_custom_call.1} parent=1 // pred_check_branch
      %14 = sbr.rel (0) target = $region9
    $region8: #{tpu_custom_call.1} parent=1 // pred_region
      _
    $region9: #{tpu_custom_call.1} parent=1 // pred_fallthru
      _
    // Predicated region
    $region10: #{tpu_custom_call.1} parent=1 // pred_check
      _
    $region11: #{tpu_custom_call.1} parent=1 // pred_check_branch
      %16 = sbr.rel (0) target = $region13
    $region12: #{tpu_custom_call.1} parent=1 // pred_region
      _
    $region13: #{tpu_custom_call.1} parent=1 // pred_fallthru
      _
    // Predicated region
    $region14: #{tpu_custom_call.1} parent=1 // pred_check
      _
    $region15: #{tpu_custom_call.1} parent=1 // pred_check_branch
      %18 = sbr.rel (0) target = $region17
    $region16: #{tpu_custom_call.1} parent=1 // pred_region
      _
    $region17: #{tpu_custom_call.1} parent=1 // pred_fallthru
      _
    // Predicated region
    $region18: #{tpu_custom_call.1} parent=1 // pred_check
      _
    $region19: #{tpu_custom_call.1} parent=1 // pred_check_branch
      %20 = sbr.rel (0) target = $region21
    $region20: #{tpu_custom_call.1} parent=1 // pred_region
      _
    $region21: #{tpu_custom_call.1} parent=1 // pred_fallthru
      _
    %v22 = vld [vmem:[%s0] sm:$0xf]
    %v23 = vld [vmem:[%s0 + $0x4] sm:$0xf]
    %v24 = vld [vmem:[%s0 + $0x8] sm:$0xf]
    %v25 = vld [vmem:[%s0 + $0xc] sm:$0xf]
    %v26 = vld [vmem:[%s0 + $0x10] sm:$0xf]
    %v27 = vld [vmem:[%s0 + $0x14] sm:$0xf]
    %v28 = vld [vmem:[%s0 + $0x18] sm:$0xf]
    %v29 = vld [vmem:[%s0 + $0x1c] sm:$0xf]
    %v30 = vld [vmem:[%s0 + $0x20] sm:$0xf]
    %v31 = vld [vmem:[%s0 + $0x24] sm:$0xf]
    %v32 = vld [vmem:[%s0 + $0x28] sm:$0xf]
    %v33 = vld [vmem:[%s0 + $0x2c] sm:$0xf]
    %v34 = vld [vmem:[%s0 + $0x30] sm:$0xf]
    %v35 = vld [vmem:[%s0 + $0x34] sm:$0xf]
    %v36 = vld [vmem:[%s0 + $0x38] sm:$0xf]
    %v37 = vld [vmem:[%s0 + $0x3c] sm:$0xf]
    %v38 = vld [vmem:[%s0 + $0x40] sm:$0xf]
    %v39 = vld [vmem:[%s0 + $0x44] sm:$0xf]
    %v40 = vld [vmem:[%s0 + $0x48] sm:$0xf]
    %v41 = vld [vmem:[%s0 + $0x4c] sm:$0xf]
    %v42 = vld [vmem:[%s0 + $0x50] sm:$0xf]
    %v43 = vld [vmem:[%s0 + $0x54] sm:$0xf]
    %v44 = vld [vmem:[%s0 + $0x58] sm:$0xf]
    %v45 = vld [vmem:[%s0 + $0x5c] sm:$0xf]
    %v46 = vld [vmem:[%s0 + $0x60] sm:$0xf]
    %v47 = vld [vmem:[%s0 + $0x64] sm:$0xf]
    %v48 = vld [vmem:[%s0 + $0x68] sm:$0xf]
    %v49 = vld [vmem:[%s0 + $0x6c] sm:$0xf]
    %v50 = vld [vmem:[%s0 + $0x70] sm:$0xf]
    %v51 = vld [vmem:[%s0 + $0x74] sm:$0xf]
    %v52 = vld [vmem:[%s0 + $0x78] sm:$0xf]
    %v53 = vld [vmem:[%s0 + $0x7c] sm:$0xf]
    %v54 = vld [vmem:[%s0 + $0x80] sm:$0xf]
    %v55 = vld [vmem:[%s0 + $0x84] sm:$0xf]
    %v56 = vld [vmem:[%s0 + $0x88] sm:$0xf]
    %v57 = vld [vmem:[%s0 + $0x8c] sm:$0xf]
    %v58 = vld [vmem:[%s0 + $0x90] sm:$0xf]
    %v59 = vld [vmem:[%s0 + $0x94] sm:$0xf]
    %v60 = vld [vmem:[%s0 + $0x98] sm:$0xf]
    %v61 = vld [vmem:[%s0 + $0x9c] sm:$0xf]
    %v62 = vld [vmem:[%s0 + $0xa0] sm:$0xf]
    %v63 = vld [vmem:[%s0 + $0xa4] sm:$0xf]
    %v64 = vld [vmem:[%s0 + $0xa8] sm:$0xf]
    %v65 = vld [vmem:[%s0 + $0xac] sm:$0xf]
    %v66 = vld [vmem:[%s0 + $0xb0] sm:$0xf]
    %v67 = vld [vmem:[%s0 + $0xb4] sm:$0xf]
    %v68 = vld [vmem:[%s0 + $0xb8] sm:$0xf]
    %v69 = vld [vmem:[%s0 + $0xbc] sm:$0xf]
    %v70 = vld [vmem:[%s0 + $0xc0] sm:$0xf]
    %v71 = vld [vmem:[%s0 + $0xc4] sm:$0xf]
    %v72 = vld [vmem:[%s0 + $0xc8] sm:$0xf]
    %v73 = vld [vmem:[%s0 + $0xcc] sm:$0xf]
    %v74 = vld [vmem:[%s0 + $0xd0] sm:$0xf]
    %v75 = vld [vmem:[%s0 + $0xd4] sm:$0xf]
    %v76 = vld [vmem:[%s0 + $0xd8] sm:$0xf]
    %v77 = vld [vmem:[%s0 + $0xdc] sm:$0xf]
    %v78 = vld [vmem:[%s0 + $0xe0] sm:$0xf]
    %v79 = vld [vmem:[%s0 + $0xe4] sm:$0xf]
    %v80 = vld [vmem:[%s0 + $0xe8] sm:$0xf]
    %v81 = vld [vmem:[%s0 + $0xec] sm:$0xf]
    %v82 = vld [vmem:[%s0 + $0xf0] sm:$0xf]
    %v83 = vld [vmem:[%s0 + $0xf4] sm:$0xf]
    %v84 = vld [vmem:[%s0 + $0xf8] sm:$0xf]
    %v85 = vld [vmem:[%s0 + $0xfc] sm:$0xf]
    %v86 = vld [vmem:[%s2] sm:$0x3]
    %v151 = vunpack.c.l.b16 %v22
    %v152 = vunpack.c.l.b16 %v23
    %v153 = vunpack.c.l.b16 %v24
    %v154 = vunpack.c.l.b16 %v25
    %v155 = vunpack.c.l.b16 %v26
    %v156 = vunpack.c.l.b16 %v27
    %v157 = vunpack.c.l.b16 %v28
    %v158 = vunpack.c.l.b16 %v29
    %v159 = vunpack.c.l.b16 %v30
    %v160 = vunpack.c.l.b16 %v31
    %v161 = vunpack.c.l.b16 %v32
    %v162 = vunpack.c.l.b16 %v33
    %v163 = vunpack.c.l.b16 %v34
    %v164 = vunpack.c.l.b16 %v35
    %v165 = vunpack.c.l.b16 %v36
    %v166 = vunpack.c.l.b16 %v37
    %v167 = vunpack.c.l.b16 %v38
    %v168 = vunpack.c.l.b16 %v39
    %v169 = vunpack.c.l.b16 %v40
    %v170 = vunpack.c.l.b16 %v41
    %v171 = vunpack.c.l.b16 %v42
    %v172 = vunpack.c.l.b16 %v43
    %v173 = vunpack.c.l.b16 %v44
    %v174 = vunpack.c.l.b16 %v45
    %v175 = vunpack.c.l.b16 %v46
    %v176 = vunpack.c.l.b16 %v47
    %v177 = vunpack.c.l.b16 %v48
    %v178 = vunpack.c.l.b16 %v49
    %v179 = vunpack.c.l.b16 %v50
    %v180 = vunpack.c.l.b16 %v51
    %v181 = vunpack.c.l.b16 %v52
    %v182 = vunpack.c.l.b16 %v53
    %v183 = vunpack.c.l.b16 %v54
    %v184 = vunpack.c.l.b16 %v55
    %v185 = vunpack.c.l.b16 %v56
    %v186 = vunpack.c.l.b16 %v57
    %v187 = vunpack.c.l.b16 %v58
    %v188 = vunpack.c.l.b16 %v59
    %v189 = vunpack.c.l.b16 %v60
    %v190 = vunpack.c.l.b16 %v61
    %v191 = vunpack.c.l.b16 %v62
    %v192 = vunpack.c.l.b16 %v63
    %v193 = vunpack.c.l.b16 %v64
    %v194 = vunpack.c.l.b16 %v65
    %v195 = vunpack.c.l.b16 %v66
    %v196 = vunpack.c.l.b16 %v67
    %v197 = vunpack.c.l.b16 %v68
    %v198 = vunpack.c.l.b16 %v69
    %v199 = vunpack.c.l.b16 %v70
    %v200 = vunpack.c.l.b16 %v71
    %v201 = vunpack.c.l.b16 %v72
    %v202 = vunpack.c.l.b16 %v73
    %v203 = vunpack.c.l.b16 %v74
    %v204 = vunpack.c.l.b16 %v75
    %v205 = vunpack.c.l.b16 %v76
    %v206 = vunpack.c.l.b16 %v77
    %v207 = vunpack.c.l.b16 %v78
    %v208 = vunpack.c.l.b16 %v79
    %v209 = vunpack.c.l.b16 %v80
    %v210 = vunpack.c.l.b16 %v81
    %v211 = vunpack.c.l.b16 %v82
    %v212 = vunpack.c.l.b16 %v83
    %v213 = vunpack.c.l.b16 %v84
    %v214 = vunpack.c.l.b16 %v85
    %v215 = vpack.c.b16 %v152, %v151
    %v216 = vpack.c.b16 %v154, %v153
    %v217 = vpack.c.b16 %v156, %v155
    %v218 = vpack.c.b16 %v158, %v157
    %v219 = vpack.c.b16 %v160, %v159
    %v220 = vpack.c.b16 %v162, %v161
    %v221 = vpack.c.b16 %v164, %v163
    %v222 = vpack.c.b16 %v166, %v165
    %v223 = vpack.c.b16 %v168, %v167
    %v224 = vpack.c.b16 %v170, %v169
    %v225 = vpack.c.b16 %v172, %v171
    %v226 = vpack.c.b16 %v174, %v173
    %v227 = vpack.c.b16 %v176, %v175
    %v228 = vpack.c.b16 %v178, %v177
    %v229 = vpack.c.b16 %v180, %v179
    %v230 = vpack.c.b16 %v182, %v181
    %v231 = vpack.c.b16 %v184, %v183
    %v232 = vpack.c.b16 %v186, %v185
    %v233 = vpack.c.b16 %v188, %v187
    %v234 = vpack.c.b16 %v190, %v189
    %v235 = vpack.c.b16 %v192, %v191
    %v236 = vpack.c.b16 %v194, %v193
    %v237 = vpack.c.b16 %v196, %v195
    %v238 = vpack.c.b16 %v198, %v197
    %v239 = vpack.c.b16 %v200, %v199
    %v240 = vpack.c.b16 %v202, %v201
    %v241 = vpack.c.b16 %v204, %v203
    %v242 = vpack.c.b16 %v206, %v205
    %v243 = vpack.c.b16 %v208, %v207
    %v244 = vpack.c.b16 %v210, %v209
    %v245 = vpack.c.b16 %v212, %v211
    %v246 = vpack.c.b16 %v214, %v213
    %vm247 = vcmask 31744
    %v249 = vsel %vm247, %v215, 0
    %v252 = vsel %vm247, %v216, 0
    %v255 = vsel %vm247, %v217, 0
    %v258 = vsel %vm247, %v218, 0
    %v261 = vsel %vm247, %v219, 0
    %v264 = vsel %vm247, %v220, 0
    %v267 = vsel %vm247, %v221, 0
    %v270 = vsel %vm247, %v222, 0
    %v273 = vsel %vm247, %v223, 0
    %v276 = vsel %vm247, %v224, 0
    %v279 = vsel %vm247, %v225, 0
    %v282 = vsel %vm247, %v226, 0
    %v285 = vsel %vm247, %v227, 0
    %v288 = vsel %vm247, %v228, 0
    %v291 = vsel %vm247, %v229, 0
    %v294 = vsel %vm247, %v230, 0
    %v297 = vsel %vm247, %v231, 0
    %v300 = vsel %vm247, %v232, 0
    %v303 = vsel %vm247, %v233, 0
    %v306 = vsel %vm247, %v234, 0
    %v309 = vsel %vm247, %v235, 0
    %v312 = vsel %vm247, %v236, 0
    %v315 = vsel %vm247, %v237, 0
    %v318 = vsel %vm247, %v238, 0
    %v321 = vsel %vm247, %v239, 0
    %v324 = vsel %vm247, %v240, 0
    %v327 = vsel %vm247, %v241, 0
    %v330 = vsel %vm247, %v242, 0
    %v333 = vsel %vm247, %v243, 0
    %v336 = vsel %vm247, %v244, 0
    %v339 = vsel %vm247, %v245, 0
    %v342 = vsel %vm247, %v246, 0
    %vm344 = vcmask 1041408
    %v346 = vsel %vm344, %v86, 0
    %348 = vmatprep.subr.bf16.mxu0 0
    %349 = vmatpush1.bf16.msra.mxu0 %v346
    %350 = vmatprep.subr.bf16.mxu0 0
    %351 = vmatpush1.bf16.msra.mxu0 0
    %352 = vmatprep.subr.bf16.mxu0 0
    %353 = vmatpush1.bf16.msra.mxu0 0
    %354 = vmatprep.subr.bf16.mxu0 0
    %355 = vmatpush1.bf16.msra.mxu0 0
    %356 = vmatprep.subr.bf16.mxu0 0
    %357 = vmatpush1.bf16.msra.mxu0 0
    %358 = vmatprep.subr.bf16.mxu0 0
    %359 = vmatpush1.bf16.msra.mxu0 0
    %360 = vmatprep.subr.bf16.mxu0 0
    %361 = vmatpush1.bf16.msra.mxu0 0
    %362 = vmatprep.subr.bf16.mxu0 0
    %363 = vmatpush1.bf16.msra.mxu0 0
    %364 = vmatprep.subr.bf16.mxu0 0
    %365 = vmatpush1.bf16.msra.mxu0 0
    %366 = vmatprep.subr.bf16.mxu0 0
    %367 = vmatpush1.bf16.msra.mxu0 0
    %368 = vmatprep.subr.bf16.mxu0 0
    %369 = vmatpush1.bf16.msra.mxu0 0
    %370 = vmatprep.subr.bf16.mxu0 0
    %371 = vmatpush1.bf16.msra.mxu0 0
    %372 = vmatprep.subr.bf16.mxu0 0
    %373 = vmatpush1.bf16.msra.mxu0 0
    %374 = vmatprep.subr.bf16.mxu0 0
    %375 = vmatpush1.bf16.msra.mxu0 0
    %376 = vmatprep.subr.bf16.mxu0 0
    %377 = vmatpush1.bf16.msra.mxu0 0
    %378 = vmatprep.subr.bf16.mxu0 0
    %379 = vmatpush1.bf16.msra.mxu0 0
    %380 = vmatprep.mubr.bf16.mxu0 0
    %381 = vmatmul.mubr.bf16.gmra.mrb[0].mxu0 %v249
    %v382 = vpop.f32.mrb[0].mxu0
    %v383 = vadd.f32 0.0, %v382
    %v384 = vpop.f32.mrb[0].mxu0
    %v385 = vpop.f32.mrb[0].mxu0
    %v386 = vadd.f32 0.0, %v385
    %v387 = vpop.f32.mrb[0].mxu0
    %388 = vmatprep.mubr.bf16.mxu0 0
    %389 = vmatmul.mubr.bf16.gmra.mrb[0].mxu0 %v252
    %v390 = vpop.f32.mrb[0].mxu0
    %v391 = vadd.f32 0.0, %v390
    %v392 = vpop.f32.mrb[0].mxu0
    %v393 = vpop.f32.mrb[0].mxu0
    %v394 = vadd.f32 0.0, %v393
    %v395 = vpop.f32.mrb[0].mxu0
    %396 = vmatprep.mubr.bf16.mxu0 0
    %397 = vmatmul.mubr.bf16.gmra.mrb[0].mxu0 %v255
    %v398 = vpop.f32.mrb[0].mxu0
    %v399 = vadd.f32 0.0, %v398
    %v400 = vpop.f32.mrb[0].mxu0
    %v401 = vpop.f32.mrb[0].mxu0
    %v402 = vadd.f32 0.0, %v401
    %v403 = vpop.f32.mrb[0].mxu0
    %404 = vmatprep.mubr.bf16.mxu0 0
    %405 = vmatmul.mubr.bf16.gmra.mrb[0].mxu0 %v258
    %v406 = vpop.f32.mrb[0].mxu0
    %v407 = vadd.f32 0.0, %v406
    %v408 = vpop.f32.mrb[0].mxu0
    %v409 = vpop.f32.mrb[0].mxu0
    %v410 = vadd.f32 0.0, %v409
    %v411 = vpop.f32.mrb[0].mxu0
    %412 = vmatprep.mubr.bf16.mxu0 0
    %413 = vmatmul.mubr.bf16.gmra.mrb[0].mxu0 %v261
    %v414 = vpop.f32.mrb[0].mxu0
    %v415 = vadd.f32 0.0, %v414
    %v416 = vpop.f32.mrb[0].mxu0
    %v417 = vpop.f32.mrb[0].mxu0
    %v418 = vadd.f32 0.0, %v417
    %v419 = vpop.f32.mrb[0].mxu0
    %420 = vmatprep.mubr.bf16.mxu0 0
    %421 = vmatmul.mubr.bf16.gmra.mrb[0].mxu0 %v264
    %v422 = vpop.f32.mrb[0].mxu0
    %v423 = vadd.f32 0.0, %v422
    %v424 = vpop.f32.mrb[0].mxu0
    %v425 = vpop.f32.mrb[0].mxu0
    %v426 = vadd.f32 0.0, %v425
    %v427 = vpop.f32.mrb[0].mxu0
    %428 = vmatprep.mubr.bf16.mxu0 0
    %429 = vmatmul.mubr.bf16.gmra.mrb[0].mxu0 %v267
    %v430 = vpop.f32.mrb[0].mxu0
    %v431 = vadd.f32 0.0, %v430
    %v432 = vpop.f32.mrb[0].mxu0
    %v433 = vpop.f32.mrb[0].mxu0
    %v434 = vadd.f32 0.0, %v433
    %v435 = vpop.f32.mrb[0].mxu0
    %436 = vmatprep.mubr.bf16.mxu0 0
    %437 = vmatmul.mubr.bf16.gmra.mrb[0].mxu0 %v270
    %v438 = vpop.f32.mrb[0].mxu0
    %v439 = vadd.f32 0.0, %v438
    %v440 = vpop.f32.mrb[0].mxu0
    %v441 = vpop.f32.mrb[0].mxu0
    %v442 = vadd.f32 0.0, %v441
    %v443 = vpop.f32.mrb[0].mxu0
    %444 = vmatprep.mubr.bf16.mxu0 0
    %445 = vmatmul.mubr.bf16.gmra.mrb[0].mxu0 %v273
    %v446 = vpop.f32.mrb[0].mxu0
    %v447 = vadd.f32 0.0, %v446
    %v448 = vpop.f32.mrb[0].mxu0
    %v449 = vpop.f32.mrb[0].mxu0
    %v450 = vadd.f32 0.0, %v449
    %v451 = vpop.f32.mrb[0].mxu0
    %452 = vmatprep.mubr.bf16.mxu0 0
    %453 = vmatmul.mubr.bf16.gmra.mrb[0].mxu0 %v276
    %v454 = vpop.f32.mrb[0].mxu0
    %v455 = vadd.f32 0.0, %v454
    %v456 = vpop.f32.mrb[0].mxu0
    %v457 = vpop.f32.mrb[0].mxu0
    %v458 = vadd.f32 0.0, %v457
    %v459 = vpop.f32.mrb[0].mxu0
    %460 = vmatprep.mubr.bf16.mxu0 0
    %461 = vmatmul.mubr.bf16.gmra.mrb[0].mxu0 %v279
    %v462 = vpop.f32.mrb[0].mxu0
    %v463 = vadd.f32 0.0, %v462
    %v464 = vpop.f32.mrb[0].mxu0
    %v465 = vpop.f32.mrb[0].mxu0
    %v466 = vadd.f32 0.0, %v465
    %v467 = vpop.f32.mrb[0].mxu0
    %468 = vmatprep.mubr.bf16.mxu0 0
    %469 = vmatmul.mubr.bf16.gmra.mrb[0].mxu0 %v282
    %v470 = vpop.f32.mrb[0].mxu0
    %v471 = vadd.f32 0.0, %v470
    %v472 = vpop.f32.mrb[0].mxu0
    %v473 = vpop.f32.mrb[0].mxu0
    %v474 = vadd.f32 0.0, %v473
    %v475 = vpop.f32.mrb[0].mxu0
    %476 = vmatprep.mubr.bf16.mxu0 0
    %477 = vmatmul.mubr.bf16.gmra.mrb[0].mxu0 %v285
    %v478 = vpop.f32.mrb[0].mxu0
    %v479 = vadd.f32 0.0, %v478
    %v480 = vpop.f32.mrb[0].mxu0
    %v481 = vpop.f32.mrb[0].mxu0
    %v482 = vadd.f32 0.0, %v481
    %v483 = vpop.f32.mrb[0].mxu0
    %484 = vmatprep.mubr.bf16.mxu0 0
    %485 = vmatmul.mubr.bf16.gmra.mrb[0].mxu0 %v288
    %v486 = vpop.f32.mrb[0].mxu0
    %v487 = vadd.f32 0.0, %v486
    %v488 = vpop.f32.mrb[0].mxu0
    %v489 = vpop.f32.mrb[0].mxu0
    %v490 = vadd.f32 0.0, %v489
    %v491 = vpop.f32.mrb[0].mxu0
    %492 = vmatprep.mubr.bf16.mxu0 0
    %493 = vmatmul.mubr.bf16.gmra.mrb[0].mxu0 %v291
    %v494 = vpop.f32.mrb[0].mxu0
    %v495 = vadd.f32 0.0, %v494
    %v496 = vpop.f32.mrb[0].mxu0
    %v497 = vpop.f32.mrb[0].mxu0
    %v498 = vadd.f32 0.0, %v497
    %v499 = vpop.f32.mrb[0].mxu0
    %500 = vmatprep.mubr.bf16.mxu0 0
    %501 = vmatmul.mubr.bf16.gmra.mrb[0].mxu0 %v294
    %v502 = vpop.f32.mrb[0].mxu0
    %v503 = vadd.f32 0.0, %v502
    %v504 = vpop.f32.mrb[0].mxu0
    %v505 = vpop.f32.mrb[0].mxu0
    %v506 = vadd.f32 0.0, %v505
    %v507 = vpop.f32.mrb[0].mxu0
    %508 = vmatprep.mubr.bf16.mxu0 0
    %509 = vmatmul.mubr.bf16.gmra.mrb[0].mxu0 %v297
    %v510 = vpop.f32.mrb[0].mxu0
    %v511 = vadd.f32 0.0, %v510
    %v512 = vpop.f32.mrb[0].mxu0
    %v513 = vpop.f32.mrb[0].mxu0
    %v514 = vadd.f32 0.0, %v513
    %v515 = vpop.f32.mrb[0].mxu0
    %516 = vmatprep.mubr.bf16.mxu0 0
    %517 = vmatmul.mubr.bf16.gmra.mrb[0].mxu0 %v300
    %v518 = vpop.f32.mrb[0].mxu0
    %v519 = vadd.f32 0.0, %v518
    %v520 = vpop.f32.mrb[0].mxu0
    %v521 = vpop.f32.mrb[0].mxu0
    %v522 = vadd.f32 0.0, %v521
    %v523 = vpop.f32.mrb[0].mxu0
    %524 = vmatprep.mubr.bf16.mxu0 0
    %525 = vmatmul.mubr.bf16.gmra.mrb[0].mxu0 %v303
    %v526 = vpop.f32.mrb[0].mxu0
    %v527 = vadd.f32 0.0, %v526
    %v528 = vpop.f32.mrb[0].mxu0
    %v529 = vpop.f32.mrb[0].mxu0
    %v530 = vadd.f32 0.0, %v529
    %v531 = vpop.f32.mrb[0].mxu0
    %532 = vmatprep.mubr.bf16.mxu0 0
    %533 = vmatmul.mubr.bf16.gmra.mrb[0].mxu0 %v306
    %v534 = vpop.f32.mrb[0].mxu0
    %v535 = vadd.f32 0.0, %v534
    %v536 = vpop.f32.mrb[0].mxu0
    %v537 = vpop.f32.mrb[0].mxu0
    %v538 = vadd.f32 0.0, %v537
    %v539 = vpop.f32.mrb[0].mxu0
    %540 = vmatprep.mubr.bf16.mxu0 0
    %541 = vmatmul.mubr.bf16.gmra.mrb[0].mxu0 %v309
    %v542 = vpop.f32.mrb[0].mxu0
    %v543 = vadd.f32 0.0, %v542
    %v544 = vpop.f32.mrb[0].mxu0
    %v545 = vpop.f32.mrb[0].mxu0
    %v546 = vadd.f32 0.0, %v545
    %v547 = vpop.f32.mrb[0].mxu0
    %548 = vmatprep.mubr.bf16.mxu0 0
    %549 = vmatmul.mubr.bf16.gmra.mrb[0].mxu0 %v312
    %v550 = vpop.f32.mrb[0].mxu0
    %v551 = vadd.f32 0.0, %v550
    %v552 = vpop.f32.mrb[0].mxu0
    %v553 = vpop.f32.mrb[0].mxu0
    %v554 = vadd.f32 0.0, %v553
    %v555 = vpop.f32.mrb[0].mxu0
    %556 = vmatprep.mubr.bf16.mxu0 0
    %557 = vmatmul.mubr.bf16.gmra.mrb[0].mxu0 %v315
    %v558 = vpop.f32.mrb[0].mxu0
    %v559 = vadd.f32 0.0, %v558
    %v560 = vpop.f32.mrb[0].mxu0
    %v561 = vpop.f32.mrb[0].mxu0
    %v562 = vadd.f32 0.0, %v561
    %v563 = vpop.f32.mrb[0].mxu0
    %564 = vmatprep.mubr.bf16.mxu0 0
    %565 = vmatmul.mubr.bf16.gmra.mrb[0].mxu0 %v318
    %v566 = vpop.f32.mrb[0].mxu0
    %v567 = vadd.f32 0.0, %v566
    %v568 = vpop.f32.mrb[0].mxu0
    %v569 = vpop.f32.mrb[0].mxu0
    %v570 = vadd.f32 0.0, %v569
    %v571 = vpop.f32.mrb[0].mxu0
    %572 = vmatprep.mubr.bf16.mxu0 0
    %573 = vmatmul.mubr.bf16.gmra.mrb[0].mxu0 %v321
    %v574 = vpop.f32.mrb[0].mxu0
    %v575 = vadd.f32 0.0, %v574
    %v576 = vpop.f32.mrb[0].mxu0
    %v577 = vpop.f32.mrb[0].mxu0
    %v578 = vadd.f32 0.0, %v577
    %v579 = vpop.f32.mrb[0].mxu0
    %580 = vmatprep.mubr.bf16.mxu0 0
    %581 = vmatmul.mubr.bf16.gmra.mrb[0].mxu0 %v324
    %v582 = vpop.f32.mrb[0].mxu0
    %v583 = vadd.f32 0.0, %v582
    %v584 = vpop.f32.mrb[0].mxu0
    %v585 = vpop.f32.mrb[0].mxu0
    %v586 = vadd.f32 0.0, %v585
    %v587 = vpop.f32.mrb[0].mxu0
    %588 = vmatprep.mubr.bf16.mxu0 0
    %589 = vmatmul.mubr.bf16.gmra.mrb[0].mxu0 %v327
    %v590 = vpop.f32.mrb[0].mxu0
    %v591 = vadd.f32 0.0, %v590
    %v592 = vpop.f32.mrb[0].mxu0
    %v593 = vpop.f32.mrb[0].mxu0
    %v594 = vadd.f32 0.0, %v593
    %v595 = vpop.f32.mrb[0].mxu0
    %596 = vmatprep.mubr.bf16.mxu0 0
    %597 = vmatmul.mubr.bf16.gmra.mrb[0].mxu0 %v330
    %v598 = vpop.f32.mrb[0].mxu0
    %v599 = vadd.f32 0.0, %v598
    %v600 = vpop.f32.mrb[0].mxu0
    %v601 = vpop.f32.mrb[0].mxu0
    %v602 = vadd.f32 0.0, %v601
    %v603 = vpop.f32.mrb[0].mxu0
    %604 = vmatprep.mubr.bf16.mxu0 0
    %605 = vmatmul.mubr.bf16.gmra.mrb[0].mxu0 %v333
    %v606 = vpop.f32.mrb[0].mxu0
    %v607 = vadd.f32 0.0, %v606
    %v608 = vpop.f32.mrb[0].mxu0
    %v609 = vpop.f32.mrb[0].mxu0
    %v610 = vadd.f32 0.0, %v609
    %v611 = vpop.f32.mrb[0].mxu0
    %612 = vmatprep.mubr.bf16.mxu0 0
    %613 = vmatmul.mubr.bf16.gmra.mrb[0].mxu0 %v336
    %v614 = vpop.f32.mrb[0].mxu0
    %v615 = vadd.f32 0.0, %v614
    %v616 = vpop.f32.mrb[0].mxu0
    %v617 = vpop.f32.mrb[0].mxu0
    %v618 = vadd.f32 0.0, %v617
    %v619 = vpop.f32.mrb[0].mxu0
    %620 = vmatprep.mubr.bf16.mxu0 0
    %621 = vmatmul.mubr.bf16.gmra.mrb[0].mxu0 %v339
    %v622 = vpop.f32.mrb[0].mxu0
    %v623 = vadd.f32 0.0, %v622
    %v624 = vpop.f32.mrb[0].mxu0
    %v625 = vpop.f32.mrb[0].mxu0
    %v626 = vadd.f32 0.0, %v625
    %v627 = vpop.f32.mrb[0].mxu0
    %628 = vmatprep.mubr.bf16.mxu0 0
    %629 = vmatmul.mubr.bf16.gmra.mrb[0].mxu0 %v342
    %v630 = vpop.f32.mrb[0].mxu0
    %v631 = vadd.f32 0.0, %v630
    %v632 = vpop.f32.mrb[0].mxu0
    %v633 = vpop.f32.mrb[0].mxu0
    %v634 = vadd.f32 0.0, %v633
    %v635 = vpop.f32.mrb[0].mxu0
    %636 = vdwg.mxu0
    %v637 = vsub.f32 0.0, %v383
    %v638 = vsub.f32 0.0, %v386
    %v639 = vsub.f32 0.0, %v391
    %v640 = vsub.f32 0.0, %v394
    %v641 = vsub.f32 0.0, %v399
    %v642 = vsub.f32 0.0, %v402
    %v643 = vsub.f32 0.0, %v407
    %v644 = vsub.f32 0.0, %v410
    %v645 = vsub.f32 0.0, %v415
    %v646 = vsub.f32 0.0, %v418
    %v647 = vsub.f32 0.0, %v423
    %v648 = vsub.f32 0.0, %v426
    %v649 = vsub.f32 0.0, %v431
    %v650 = vsub.f32 0.0, %v434
    %v651 = vsub.f32 0.0, %v439
    %v652 = vsub.f32 0.0, %v442
    %v653 = vsub.f32 0.0, %v447
    %v654 = vsub.f32 0.0, %v450
    %v655 = vsub.f32 0.0, %v455
    %v656 = vsub.f32 0.0, %v458
    %v657 = vsub.f32 0.0, %v463
    %v658 = vsub.f32 0.0, %v466
    %v659 = vsub.f32 0.0, %v471
    %v660 = vsub.f32 0.0, %v474
    %v661 = vsub.f32 0.0, %v479
    %v662 = vsub.f32 0.0, %v482
    %v663 = vsub.f32 0.0, %v487
    %v664 = vsub.f32 0.0, %v490
    %v665 = vsub.f32 0.0, %v495
    %v666 = vsub.f32 0.0, %v498
    %v667 = vsub.f32 0.0, %v503
    %v668 = vsub.f32 0.0, %v506
    %v669 = vsub.f32 0.0, %v511
    %v670 = vsub.f32 0.0, %v514
    %v671 = vsub.f32 0.0, %v519
    %v672 = vsub.f32 0.0, %v522
    %v673 = vsub.f32 0.0, %v527
    %v674 = vsub.f32 0.0, %v530
    %v675 = vsub.f32 0.0, %v535
    %v676 = vsub.f32 0.0, %v538
    %v677 = vsub.f32 0.0, %v543
    %v678 = vsub.f32 0.0, %v546
    %v679 = vsub.f32 0.0, %v551
    %v680 = vsub.f32 0.0, %v554
    %v681 = vsub.f32 0.0, %v559
    %v682 = vsub.f32 0.0, %v562
    %v683 = vsub.f32 0.0, %v567
    %v684 = vsub.f32 0.0, %v570
    %v685 = vsub.f32 0.0, %v575
    %v686 = vsub.f32 0.0, %v578
    %v687 = vsub.f32 0.0, %v583
    %v688 = vsub.f32 0.0, %v586
    %v689 = vsub.f32 0.0, %v591
    %v690 = vsub.f32 0.0, %v594
    %v691 = vsub.f32 0.0, %v599
    %v692 = vsub.f32 0.0, %v602
    %v693 = vsub.f32 0.0, %v607
    %v694 = vsub.f32 0.0, %v610
    %v695 = vsub.f32 0.0, %v615
    %v696 = vsub.f32 0.0, %v618
    %v697 = vsub.f32 0.0, %v623
    %v698 = vsub.f32 0.0, %v626
    %v699 = vsub.f32 0.0, %v631
    %v700 = vsub.f32 0.0, %v634
    %v701 = vmul.f32 %v637, 1.442695
    %v702 = vpow.pop %v701
    %v703 = vmul.f32 %v638, 1.442695
    %v704 = vpow.pop %v703
    %v705 = vmul.f32 %v639, 1.442695
    %v706 = vpow.pop %v705
    %v707 = vmul.f32 %v640, 1.442695
    %v708 = vpow.pop %v707
    %v709 = vmul.f32 %v641, 1.442695
    %v710 = vpow.pop %v709
    %v711 = vmul.f32 %v642, 1.442695
    %v712 = vpow.pop %v711
    %v713 = vmul.f32 %v643, 1.442695
    %v714 = vpow.pop %v713
    %v715 = vmul.f32 %v644, 1.442695
    %v716 = vpow.pop %v715
    %v717 = vmul.f32 %v645, 1.442695
    %v718 = vpow.pop %v717
    %v719 = vmul.f32 %v646, 1.442695
    %v720 = vpow.pop %v719
    %v721 = vmul.f32 %v647, 1.442695
    %v722 = vpow.pop %v721
    %v723 = vmul.f32 %v648, 1.442695
    %v724 = vpow.pop %v723
    %v725 = vmul.f32 %v649, 1.442695
    %v726 = vpow.pop %v725
    %v727 = vmul.f32 %v650, 1.442695
    %v728 = vpow.pop %v727
    %v729 = vmul.f32 %v651, 1.442695
    %v730 = vpow.pop %v729
    %v731 = vmul.f32 %v652, 1.442695
    %v732 = vpow.pop %v731
    %v733 = vmul.f32 %v653, 1.442695
    %v734 = vpow.pop %v733
    %v735 = vmul.f32 %v654, 1.442695
    %v736 = vpow.pop %v735
    %v737 = vmul.f32 %v655, 1.442695
    %v738 = vpow.pop %v737
    %v739 = vmul.f32 %v656, 1.442695
    %v740 = vpow.pop %v739
    %v741 = vmul.f32 %v657, 1.442695
    %v742 = vpow.pop %v741
    %v743 = vmul.f32 %v658, 1.442695
    %v744 = vpow.pop %v743
    %v745 = vmul.f32 %v659, 1.442695
    %v746 = vpow.pop %v745
    %v747 = vmul.f32 %v660, 1.442695
    %v748 = vpow.pop %v747
    %v749 = vmul.f32 %v661, 1.442695
    %v750 = vpow.pop %v749
    %v751 = vmul.f32 %v662, 1.442695
    %v752 = vpow.pop %v751
    %v753 = vmul.f32 %v663, 1.442695
    %v754 = vpow.pop %v753
    %v755 = vmul.f32 %v664, 1.442695
    %v756 = vpow.pop %v755
    %v757 = vmul.f32 %v665, 1.442695
    %v758 = vpow.pop %v757
    %v759 = vmul.f32 %v666, 1.442695
    %v760 = vpow.pop %v759
    %v761 = vmul.f32 %v667, 1.442695
    %v762 = vpow.pop %v761
    %v763 = vmul.f32 %v668, 1.442695
    %v764 = vpow.pop %v763
    %v765 = vmul.f32 %v669, 1.442695
    %v766 = vpow.pop %v765
    %v767 = vmul.f32 %v670, 1.442695
    %v768 = vpow.pop %v767
    %v769 = vmul.f32 %v671, 1.442695
    %v770 = vpow.pop %v769
    %v771 = vmul.f32 %v672, 1.442695
    %v772 = vpow.pop %v771
    %v773 = vmul.f32 %v673, 1.442695
    %v774 = vpow.pop %v773
    %v775 = vmul.f32 %v674, 1.442695
    %v776 = vpow.pop %v775
    %v777 = vmul.f32 %v675, 1.442695
    %v778 = vpow.pop %v777
    %v779 = vmul.f32 %v676, 1.442695
    %v780 = vpow.pop %v779
    %v781 = vmul.f32 %v677, 1.442695
    %v782 = vpow.pop %v781
    %v783 = vmul.f32 %v678, 1.442695
    %v784 = vpow.pop %v783
    %v785 = vmul.f32 %v679, 1.442695
    %v786 = vpow.pop %v785
    %v787 = vmul.f32 %v680, 1.442695
    %v788 = vpow.pop %v787
    %v789 = vmul.f32 %v681, 1.442695
    %v790 = vpow.pop %v789
    %v791 = vmul.f32 %v682, 1.442695
    %v792 = vpow.pop %v791
    %v793 = vmul.f32 %v683, 1.442695
    %v794 = vpow.pop %v793
    %v795 = vmul.f32 %v684, 1.442695
    %v796 = vpow.pop %v795
    %v797 = vmul.f32 %v685, 1.442695
    %v798 = vpow.pop %v797
    %v799 = vmul.f32 %v686, 1.442695
    %v800 = vpow.pop %v799
    %v801 = vmul.f32 %v687, 1.442695
    %v802 = vpow.pop %v801
    %v803 = vmul.f32 %v688, 1.442695
    %v804 = vpow.pop %v803
    %v805 = vmul.f32 %v689, 1.442695
    %v806 = vpow.pop %v805
    %v807 = vmul.f32 %v690, 1.442695
    %v808 = vpow.pop %v807
    %v809 = vmul.f32 %v691, 1.442695
    %v810 = vpow.pop %v809
    %v811 = vmul.f32 %v692, 1.442695
    %v812 = vpow.pop %v811
    %v813 = vmul.f32 %v693, 1.442695
    %v814 = vpow.pop %v813
    %v815 = vmul.f32 %v694, 1.442695
    %v816 = vpow.pop %v815
    %v817 = vmul.f32 %v695, 1.442695
    %v818 = vpow.pop %v817
    %v819 = vmul.f32 %v696, 1.442695
    %v820 = vpow.pop %v819
    %v821 = vmul.f32 %v697, 1.442695
    %v822 = vpow.pop %v821
    %v823 = vmul.f32 %v698, 1.442695
    %v824 = vpow.pop %v823
    %v825 = vmul.f32 %v699, 1.442695
    %v826 = vpow.pop %v825
    %v827 = vmul.f32 %v700, 1.442695
    %v828 = vpow.pop %v827
    %v829 = vadd.f32 %v702, 1.0
    %v830 = vadd.f32 %v704, 1.0
    %v831 = vadd.f32 %v706, 1.0
    %v832 = vadd.f32 %v708, 1.0
    %v833 = vadd.f32 %v710, 1.0
    %v834 = vadd.f32 %v712, 1.0
    %v835 = vadd.f32 %v714, 1.0
    %v836 = vadd.f32 %v716, 1.0
    %v837 = vadd.f32 %v718, 1.0
    %v838 = vadd.f32 %v720, 1.0
    %v839 = vadd.f32 %v722, 1.0
    %v840 = vadd.f32 %v724, 1.0
    %v841 = vadd.f32 %v726, 1.0
    %v842 = vadd.f32 %v728, 1.0
    %v843 = vadd.f32 %v730, 1.0
    %v844 = vadd.f32 %v732, 1.0
    %v845 = vadd.f32 %v734, 1.0
    %v846 = vadd.f32 %v736, 1.0
    %v847 = vadd.f32 %v738, 1.0
    %v848 = vadd.f32 %v740, 1.0
    %v849 = vadd.f32 %v742, 1.0
    %v850 = vadd.f32 %v744, 1.0
    %v851 = vadd.f32 %v746, 1.0
    %v852 = vadd.f32 %v748, 1.0
    %v853 = vadd.f32 %v750, 1.0
    %v854 = vadd.f32 %v752, 1.0
    %v855 = vadd.f32 %v754, 1.0
    %v856 = vadd.f32 %v756, 1.0
    %v857 = vadd.f32 %v758, 1.0
    %v858 = vadd.f32 %v760, 1.0
    %v859 = vadd.f32 %v762, 1.0
    %v860 = vadd.f32 %v764, 1.0
    %v861 = vadd.f32 %v766, 1.0
    %v862 = vadd.f32 %v768, 1.0
    %v863 = vadd.f32 %v770, 1.0
    %v864 = vadd.f32 %v772, 1.0
    %v865 = vadd.f32 %v774, 1.0
    %v866 = vadd.f32 %v776, 1.0
    %v867 = vadd.f32 %v778, 1.0
    %v868 = vadd.f32 %v780, 1.0
    %v869 = vadd.f32 %v782, 1.0
    %v870 = vadd.f32 %v784, 1.0
    %v871 = vadd.f32 %v786, 1.0
    %v872 = vadd.f32 %v788, 1.0
    %v873 = vadd.f32 %v790, 1.0
    %v874 = vadd.f32 %v792, 1.0
    %v875 = vadd.f32 %v794, 1.0
    %v876 = vadd.f32 %v796, 1.0
    %v877 = vadd.f32 %v798, 1.0
    %v878 = vadd.f32 %v800, 1.0
    %v879 = vadd.f32 %v802, 1.0
    %v880 = vadd.f32 %v804, 1.0
    %v881 = vadd.f32 %v806, 1.0
    %v882 = vadd.f32 %v808, 1.0
    %v883 = vadd.f32 %v810, 1.0
    %v884 = vadd.f32 %v812, 1.0
    %v885 = vadd.f32 %v814, 1.0
    %v886 = vadd.f32 %v816, 1.0
    %v887 = vadd.f32 %v818, 1.0
    %v888 = vadd.f32 %v820, 1.0
    %v889 = vadd.f32 %v822, 1.0
    %v890 = vadd.f32 %v824, 1.0
    %v891 = vadd.f32 %v826, 1.0
    %v892 = vadd.f32 %v828, 1.0
    %v893 = vrcp.pop %v829
    %v894 = vrcp.pop %v830
    %v895 = vrcp.pop %v831
    %v896 = vrcp.pop %v832
    %v897 = vrcp.pop %v833
    %v898 = vrcp.pop %v834
    %v899 = vrcp.pop %v835
    %v900 = vrcp.pop %v836
    %v901 = vrcp.pop %v837
    %v902 = vrcp.pop %v838
    %v903 = vrcp.pop %v839
    %v904 = vrcp.pop %v840
    %v905 = vrcp.pop %v841
    %v906 = vrcp.pop %v842
    %v907 = vrcp.pop %v843
    %v908 = vrcp.pop %v844
    %v909 = vrcp.pop %v845
    %v910 = vrcp.pop %v846
    %v911 = vrcp.pop %v847
    %v912 = vrcp.pop %v848
    %v913 = vrcp.pop %v849
    %v914 = vrcp.pop %v850
    %v915 = vrcp.pop %v851
    %v916 = vrcp.pop %v852
    %v917 = vrcp.pop %v853
    %v918 = vrcp.pop %v854
    %v919 = vrcp.pop %v855
    %v920 = vrcp.pop %v856
    %v921 = vrcp.pop %v857
    %v922 = vrcp.pop %v858
    %v923 = vrcp.pop %v859
    %v924 = vrcp.pop %v860
    %v925 = vrcp.pop %v861
    %v926 = vrcp.pop %v862
    %v927 = vrcp.pop %v863
    %v928 = vrcp.pop %v864
    %v929 = vrcp.pop %v865
    %v930 = vrcp.pop %v866
    %v931 = vrcp.pop %v867
    %v932 = vrcp.pop %v868
    %v933 = vrcp.pop %v869
    %v934 = vrcp.pop %v870
    %v935 = vrcp.pop %v871
    %v936 = vrcp.pop %v872
    %v937 = vrcp.pop %v873
    %v938 = vrcp.pop %v874
    %v939 = vrcp.pop %v875
    %v940 = vrcp.pop %v876
    %v941 = vrcp.pop %v877
    %v942 = vrcp.pop %v878
    %v943 = vrcp.pop %v879
    %v944 = vrcp.pop %v880
    %v945 = vrcp.pop %v881
    %v946 = vrcp.pop %v882
    %v947 = vrcp.pop %v883
    %v948 = vrcp.pop %v884
    %v949 = vrcp.pop %v885
    %v950 = vrcp.pop %v886
    %v951 = vrcp.pop %v887
    %v952 = vrcp.pop %v888
    %v953 = vrcp.pop %v889
    %v954 = vrcp.pop %v890
    %v955 = vrcp.pop %v891
    %v956 = vrcp.pop %v892
    %v957 = vmul.f32 %v383, %v893
    %v958 = vmul.f32 %v386, %v894
    %v959 = vmul.f32 %v391, %v895
    %v960 = vmul.f32 %v394, %v896
    %v961 = vmul.f32 %v399, %v897
    %v962 = vmul.f32 %v402, %v898
    %v963 = vmul.f32 %v407, %v899
    %v964 = vmul.f32 %v410, %v900
    %v965 = vmul.f32 %v415, %v901
    %v966 = vmul.f32 %v418, %v902
    %v967 = vmul.f32 %v423, %v903
    %v968 = vmul.f32 %v426, %v904
    %v969 = vmul.f32 %v431, %v905
    %v970 = vmul.f32 %v434, %v906
    %v971 = vmul.f32 %v439, %v907
    %v972 = vmul.f32 %v442, %v908
    %v973 = vmul.f32 %v447, %v909
    %v974 = vmul.f32 %v450, %v910
    %v975 = vmul.f32 %v455, %v911
    %v976 = vmul.f32 %v458, %v912
    %v977 = vmul.f32 %v463, %v913
    %v978 = vmul.f32 %v466, %v914
    %v979 = vmul.f32 %v471, %v915
    %v980 = vmul.f32 %v474, %v916
    %v981 = vmul.f32 %v479, %v917
    %v982 = vmul.f32 %v482, %v918
    %v983 = vmul.f32 %v487, %v919
    %v984 = vmul.f32 %v490, %v920
    %v985 = vmul.f32 %v495, %v921
    %v986 = vmul.f32 %v498, %v922
    %v987 = vmul.f32 %v503, %v923
    %v988 = vmul.f32 %v506, %v924
    %v989 = vmul.f32 %v511, %v925
    %v990 = vmul.f32 %v514, %v926
    %v991 = vmul.f32 %v519, %v927
    %v992 = vmul.f32 %v522, %v928
    %v993 = vmul.f32 %v527, %v929
    %v994 = vmul.f32 %v530, %v930
    %v995 = vmul.f32 %v535, %v931
    %v996 = vmul.f32 %v538, %v932
    %v997 = vmul.f32 %v543, %v933
    %v998 = vmul.f32 %v546, %v934
    %v999 = vmul.f32 %v551, %v935
    %v1000 = vmul.f32 %v554, %v936
    %v1001 = vmul.f32 %v559, %v937
    %v1002 = vmul.f32 %v562, %v938
    %v1003 = vmul.f32 %v567, %v939
    %v1004 = vmul.f32 %v570, %v940
    %v1005 = vmul.f32 %v575, %v941
    %v1006 = vmul.f32 %v578, %v942
    %v1007 = vmul.f32 %v583, %v943
    %v1008 = vmul.f32 %v586, %v944
    %v1009 = vmul.f32 %v591, %v945
    %v1010 = vmul.f32 %v594, %v946
    %v1011 = vmul.f32 %v599, %v947
    %v1012 = vmul.f32 %v602, %v948
    %v1013 = vmul.f32 %v607, %v949
    %v1014 = vmul.f32 %v610, %v950
    %v1015 = vmul.f32 %v615, %v951
    %v1016 = vmul.f32 %v618, %v952
    %v1017 = vmul.f32 %v623, %v953
    %v1018 = vmul.f32 %v626, %v954
    %v1019 = vmul.f32 %v631, %v955
    %v1020 = vmul.f32 %v634, %v956
    %v1021 = vpack.c.bf16 %v958, %v957
    %v1022 = vpack.c.bf16 %v960, %v959
    %v1023 = vpack.c.bf16 %v962, %v961
    %v1024 = vpack.c.bf16 %v964, %v963
    %v1025 = vpack.c.bf16 %v966, %v965
    %v1026 = vpack.c.bf16 %v968, %v967
    %v1027 = vpack.c.bf16 %v970, %v969
    %v1028 = vpack.c.bf16 %v972, %v971
    %v1029 = vpack.c.bf16 %v974, %v973
    %v1030 = vpack.c.bf16 %v976, %v975
    %v1031 = vpack.c.bf16 %v978, %v977
    %v1032 = vpack.c.bf16 %v980, %v979
    %v1033 = vpack.c.bf16 %v982, %v981
    %v1034 = vpack.c.bf16 %v984, %v983
    %v1035 = vpack.c.bf16 %v986, %v985
    %v1036 = vpack.c.bf16 %v988, %v987
    %v1037 = vpack.c.bf16 %v990, %v989
    %v1038 = vpack.c.bf16 %v992, %v991
    %v1039 = vpack.c.bf16 %v994, %v993
    %v1040 = vpack.c.bf16 %v996, %v995
    %v1041 = vpack.c.bf16 %v998, %v997
    %v1042 = vpack.c.bf16 %v1000, %v999
    %v1043 = vpack.c.bf16 %v1002, %v1001
    %v1044 = vpack.c.bf16 %v1004, %v1003
    %v1045 = vpack.c.bf16 %v1006, %v1005
    %v1046 = vpack.c.bf16 %v1008, %v1007
    %v1047 = vpack.c.bf16 %v1010, %v1009
    %v1048 = vpack.c.bf16 %v1012, %v1011
    %v1049 = vpack.c.bf16 %v1014, %v1013
    %v1050 = vpack.c.bf16 %v1016, %v1015
    %v1051 = vpack.c.bf16 %v1018, %v1017
    %v1052 = vpack.c.bf16 %v1020, %v1019
    %v1053 = vld [vmem:[%s1] sm:$0xf]
    %v1056 = vunpack.c.l.s4 1966171168
    %v1057 = vunpack.c.0.s8 %v1056
    %v1058 = vlaneseq
    %v1059 = vshrl.u32 %v1058, 7
    %v1060 = vsub.s32 %v1057, %v1059
    %v1061 = vrot.slane %v1053, %v1060
    %v1062 = vcombine.high %v1061, %v1061
    %v1064 = vunpack.c.l.s4 1966171168
    %v1065 = vunpack.c.0.s8 %v1064
    %v1066 = vlaneseq
    %v1067 = vshrl.u32 %v1066, 7
    %v1068 = vsub.s32 %v1065, %v1067
    %v1069 = vrot.slane %v1061, %v1068
    %v1071 = vunpack.c.l.s4 1966171168
    %v1072 = vunpack.c.0.s8 %v1071
    %v1073 = vlaneseq
    %v1074 = vshrl.u32 %v1073, 7
    %v1075 = vsub.s32 %v1072, %v1074
    %v1076 = vrot.slane %v1062, %v1075
    %v1077 = vcombine.high %v1069, %v1069
    %v1078 = vcombine.high %v1076, %v1076
    %1083 = vmatprep.subr.bf16.mxu0 0
    %1084 = vmatpush1.bf16.msra.mxu0 %v1021
    %1085 = vmatprep.subr.bf16.mxu0 0
    %1086 = vmatpush1.bf16.msra.mxu0 %v1022
    %1087 = vmatprep.subr.bf16.mxu0 0
    %1088 = vmatpush1.bf16.msra.mxu0 %v1023
    %1089 = vmatprep.subr.bf16.mxu0 0
    %1090 = vmatpush1.bf16.msra.mxu0 %v1024
    %1091 = vmatprep.subr.bf16.mxu0 0
    %1092 = vmatpush1.bf16.msra.mxu0 %v1025
    %1093 = vmatprep.subr.bf16.mxu0 0
    %1094 = vmatpush1.bf16.msra.mxu0 %v1026
    %1095 = vmatprep.subr.bf16.mxu0 0
    %1096 = vmatpush1.bf16.msra.mxu0 %v1027
    %1097 = vmatprep.subr.bf16.mxu0 0
    %1098 = vmatpush1.bf16.msra.mxu0 %v1028
    %1099 = vmatprep.subr.bf16.mxu0 0
    %1100 = vmatpush1.bf16.msra.mxu0 %v1029
    %1101 = vmatprep.subr.bf16.mxu0 0
    %1102 = vmatpush1.bf16.msra.mxu0 %v1030
    %1103 = vmatprep.subr.bf16.mxu0 0
    %1104 = vmatpush1.bf16.msra.mxu0 %v1031
    %1105 = vmatprep.subr.bf16.mxu0 0
    %1106 = vmatpush1.bf16.msra.mxu0 %v1032
    %1107 = vmatprep.subr.bf16.mxu0 0
    %1108 = vmatpush1.bf16.msra.mxu0 %v1033
    %1109 = vmatprep.subr.bf16.mxu0 0
    %1110 = vmatpush1.bf16.msra.mxu0 %v1034
    %1111 = vmatprep.subr.bf16.mxu0 0
    %1112 = vmatpush1.bf16.msra.mxu0 %v1035
    %1113 = vmatprep.subr.bf16.mxu0 0
    %1114 = vmatpush1.bf16.msra.mxu0 %v1036
    %1115 = vmatprep.mubr.bf16.mxu0 %v1076
    %1116 = vmatmul.mubr.bf16.gmra.mrb[0].mxu0 %v1069
    %v1117 = vpop.f32.mrb[0].mxu0
    %v1118 = vadd.f32 0.0, %v1117
    %v1119 = vpop.f32.mrb[0].mxu0
    %v1120 = vpop.f32.mrb[0].mxu0
    %v1121 = vpop.f32.mrb[0].mxu0
    %1122 = vdwg.mxu0
    %1123 = vmatprep.subr.bf16.mxu0 0
    %1124 = vmatpush1.bf16.msra.mxu0 %v1037
    %1125 = vmatprep.subr.bf16.mxu0 0
    %1126 = vmatpush1.bf16.msra.mxu0 %v1038
    %1127 = vmatprep.subr.bf16.mxu0 0
    %1128 = vmatpush1.bf16.msra.mxu0 %v1039
    %1129 = vmatprep.subr.bf16.mxu0 0
    %1130 = vmatpush1.bf16.msra.mxu0 %v1040
    %1131 = vmatprep.subr.bf16.mxu0 0
    %1132 = vmatpush1.bf16.msra.mxu0 %v1041
    %1133 = vmatprep.subr.bf16.mxu0 0
    %1134 = vmatpush1.bf16.msra.mxu0 %v1042
    %1135 = vmatprep.subr.bf16.mxu0 0
    %1136 = vmatpush1.bf16.msra.mxu0 %v1043
    %1137 = vmatprep.subr.bf16.mxu0 0
    %1138 = vmatpush1.bf16.msra.mxu0 %v1044
    %1139 = vmatprep.subr.bf16.mxu0 0
    %1140 = vmatpush1.bf16.msra.mxu0 %v1045
    %1141 = vmatprep.subr.bf16.mxu0 0
    %1142 = vmatpush1.bf16.msra.mxu0 %v1046
    %1143 = vmatprep.subr.bf16.mxu0 0
    %1144 = vmatpush1.bf16.msra.mxu0 %v1047
    %1145 = vmatprep.subr.bf16.mxu0 0
    %1146 = vmatpush1.bf16.msra.mxu0 %v1048
    %1147 = vmatprep.subr.bf16.mxu0 0
    %1148 = vmatpush1.bf16.msra.mxu0 %v1049
    %1149 = vmatprep.subr.bf16.mxu0 0
    %1150 = vmatpush1.bf16.msra.mxu0 %v1050
    %1151 = vmatprep.subr.bf16.mxu0 0
    %1152 = vmatpush1.bf16.msra.mxu0 %v1051
    %1153 = vmatprep.subr.bf16.mxu0 0
    %1154 = vmatpush1.bf16.msra.mxu0 %v1052
    %1155 = vmatprep.mubr.bf16.mxu0 %v1078
    %1156 = vmatmul.mubr.bf16.gmra.mrb[0].mxu0 %v1077
    %v1157 = vpop.f32.mrb[0].mxu0
    %v1158 = vadd.f32 %v1118, %v1157
    %v1159 = vpop.f32.mrb[0].mxu0
    %v1160 = vpop.f32.mrb[0].mxu0
    %v1161 = vpop.f32.mrb[0].mxu0
    %1162 = vdwg.mxu0
    %v1163 = vpack.c.bf16 %v1158, %v1158
    %v1164 = vld [vmem:[%s3] sm:$0xf]
    %v1165 = vld [vmem:[%s3 + $0x4] sm:$0xf]
    %v1166 = vld [vmem:[%s3 + $0x8] sm:$0xf]
    %v1167 = vld [vmem:[%s3 + $0xc] sm:$0xf]
    %v1168 = vld [vmem:[%s4] sm:$0x1]
    %v1170 = vlaneseq
    %v1171 = vshrl.u32 %v1170, 7
    %v1172 = vsub.s32 0, %v1171
    %v1173 = vrot.slane %v1168, %v1172
    %v1179 = vunpack.c.l.b16 %v1164
    %v1180 = vunpack.c.l.b16 %v1165
    %v1181 = vunpack.c.l.b16 %v1166
    %v1182 = vunpack.c.l.b16 %v1167
    %v1183 = vpack.c.b16 %v1180, %v1179
    %v1184 = vpack.c.b16 %v1182, %v1181
    %vm1187 = vcmask 261120
    %v1189 = vsel %vm1187, %v1163, 0
    %1191 = vmatprep.subr.bf16.mxu0 0
    %1192 = vmatpush1.bf16.msra.mxu0 %v1183
    %1193 = vmatprep.subr.bf16.mxu0 0
    %1194 = vmatpush1.bf16.msra.mxu0 %v1184
    %1195 = vmatprep.subr.bf16.mxu0 0
    %1196 = vmatpush1.bf16.msra.mxu0 0
    %1197 = vmatprep.subr.bf16.mxu0 0
    %1198 = vmatpush1.bf16.msra.mxu0 0
    %1199 = vmatprep.subr.bf16.mxu0 0
    %1200 = vmatpush1.bf16.msra.mxu0 0
    %1201 = vmatprep.subr.bf16.mxu0 0
    %1202 = vmatpush1.bf16.msra.mxu0 0
    %1203 = vmatprep.subr.bf16.mxu0 0
    %1204 = vmatpush1.bf16.msra.mxu0 0
    %1205 = vmatprep.subr.bf16.mxu0 0
    %1206 = vmatpush1.bf16.msra.mxu0 0
    %1207 = vmatprep.subr.bf16.mxu0 0
    %1208 = vmatpush1.bf16.msra.mxu0 0
    %1209 = vmatprep.subr.bf16.mxu0 0
    %1210 = vmatpush1.bf16.msra.mxu0 0
    %1211 = vmatprep.subr.bf16.mxu0 0
    %1212 = vmatpush1.bf16.msra.mxu0 0
    %1213 = vmatprep.subr.bf16.mxu0 0
    %1214 = vmatpush1.bf16.msra.mxu0 0
    %1215 = vmatprep.subr.bf16.mxu0 0
    %1216 = vmatpush1.bf16.msra.mxu0 0
    %1217 = vmatprep.subr.bf16.mxu0 0
    %1218 = vmatpush1.bf16.msra.mxu0 0
    %1219 = vmatprep.subr.bf16.mxu0 0
    %1220 = vmatpush1.bf16.msra.mxu0 0
    %1221 = vmatprep.subr.bf16.mxu0 0
    %1222 = vmatpush1.bf16.msra.mxu0 0
    %1223 = vmatprep.mubr.bf16.mxu0 0
    %1224 = vmatmul.mubr.bf16.gmra.mrb[0].mxu0 %v1189
    %v1225 = vpop.f32.mrb[0].mxu0
    %v1226 = vadd.f32 %v1173, %v1225
    %v1227 = vpop.f32.mrb[0].mxu0
    %v1228 = vpop.f32.mrb[0].mxu0
    %v1229 = vpop.f32.mrb[0].mxu0
    %1230 = vdwg.mxu0
    %1231 = vst [vmem:[#allocation2] sm:$0x3] %v1226
    // Predicated region
    $region22: #{tpu_custom_call.1} parent=1 // pred_check
      _
    $region23: #{tpu_custom_call.1} parent=1 // pred_check_branch
      %1233 = sbr.rel (0) target = $region25
    $region24: #{tpu_custom_call.1} parent=1 // pred_region
      %s1235 = ssub.s32 32, 32
      %1236 = vsyncadd [#allocation3], %s1235
      %s1238 = sshll.u32 [#allocation2], 4
      %s1239 = int_to_ptr.vmem [resolvable:$true] %s1238
      %1241 = dma.vmem_to_hbm [thread:$0]  %s1239, 32, %s5, [#allocation3]
    $region25: #{tpu_custom_call.1} parent=1 // pred_fallthru
      _
    // Predicated region
    $region26: #{tpu_custom_call.1} parent=1 // pred_check
      _
    $region27: #{tpu_custom_call.1} parent=1 // pred_check_branch
      %1243 = sbr.rel (0) target = $region29
    $region28: #{tpu_custom_call.1} parent=1 // pred_region
      %1244 = dma.done [#allocation3], 32
    $region29: #{tpu_custom_call.1} parent=1 // pred_fallthru
      _
    %1245 = vsyncpa [#allocation3], 1

// kernel: tpu_custom_call.1
$region0: #{tpu_custom_call.1}
  #allocation0 [shape = 'u32[]', space=smem, size = 0x4, offset = 0x4, fixed_abs, tag = 'smem constant byte address 0x4 - core index']
  #allocation1 [shape = 'u32[144,128]{1,0:T(1,128)}', space=vmem, size = 0x12000, scoped, tag = 'internal scratch']
  %s0 = inlined_call_operand.vmem [shape: bf16[512,4], index: 0, kind: input, shape index: {}]
  %s1 = inlined_call_operand.vmem [shape: bf16[2,512], index: 1, kind: input, shape index: {}]
  %s2 = inlined_call_operand.vmem [shape: bf16[4,32], index: 2, kind: input, shape index: {}]
  %s3 = inlined_call_operand.vmem [shape: bf16[32,128], index: 3, kind: input, shape index: {}]
  %s4 = inlined_call_operand.vmem [shape: f32[1,128], index: 4, kind: input, shape index: {}]
  %s5 = inlined_call_operand.hbm [shape: f32[2,128], index: 5, kind: output, shape index: {}]
  %s6 = sld [smem:[#allocation0]]
  $region30: #{tpu_custom_call.1} parent=0
    _
  %s8 = ssub.s32 1, %s6
  %s9 = scalar_select 0, %s8, %s6
  $region1: #{tpu_custom_call.1} parent=0
    #allocation2 [shape = 'u8[1024]{0}', space=vmem, size = 0x400, scoped, tag = 'output window, operand 0, single buffered']
    #allocation3 [shape = 's32[1]{0}', space=sflag, size = 0x4, scoped, tag = 'scoped memory for tpu_custom_call.1']
    %10 = vsyncpa [#allocation3], 0
    // Predicated region
    $region2: #{tpu_custom_call.1} parent=1 // pred_check
      _
    $region3: #{tpu_custom_call.1} parent=1 // pred_check_branch
      %12 = sbr.rel (0) target = $region5
    $region4: #{tpu_custom_call.1} parent=1 // pred_region
      _
    $region5: #{tpu_custom_call.1} parent=1 // pred_fallthru
      _
    // Predicated region
    $region6: #{tpu_custom_call.1} parent=1 // pred_check
      _
    $region7: #{tpu_custom_call.1} parent=1 // pred_check_branch
      %14 = sbr.rel (0) target = $region9
    $region8: #{tpu_custom_call.1} parent=1 // pred_region
      _
    $region9: #{tpu_custom_call.1} parent=1 // pred_fallthru
      _
    // Predicated region
    $region10: #{tpu_custom_call.1} parent=1 // pred_check
      _
    $region11: #{tpu_custom_call.1} parent=1 // pred_check_branch
      %16 = sbr.rel (0) target = $region13
    $region12: #{tpu_custom_call.1} parent=1 // pred_region
      _
    $region13: #{tpu_custom_call.1} parent=1 // pred_fallthru
      _
    // Predicated region
    $region14: #{tpu_custom_call.1} parent=1 // pred_check
      _
    $region15: #{tpu_custom_call.1} parent=1 // pred_check_branch
      %18 = sbr.rel (0) target = $region17
    $region16: #{tpu_custom_call.1} parent=1 // pred_region
      _
    $region17: #{tpu_custom_call.1} parent=1 // pred_fallthru
      _
    // Predicated region
    $region18: #{tpu_custom_call.1} parent=1 // pred_check
      _
    $region19: #{tpu_custom_call.1} parent=1 // pred_check_branch
      %20 = sbr.rel (0) target = $region21
    $region20: #{tpu_custom_call.1} parent=1 // pred_region
      _
    $region21: #{tpu_custom_call.1} parent=1 // pred_fallthru
      _
    %v22 = vld [vmem:[%s0] sm:$0xf]
    %v23 = vld [vmem:[%s0 + $0x4] sm:$0xf]
    %v24 = vld [vmem:[%s0 + $0x8] sm:$0xf]
    %v25 = vld [vmem:[%s0 + $0xc] sm:$0xf]
    %v26 = vld [vmem:[%s0 + $0x10] sm:$0xf]
    %v27 = vld [vmem:[%s0 + $0x14] sm:$0xf]
    %v28 = vld [vmem:[%s0 + $0x18] sm:$0xf]
    %v29 = vld [vmem:[%s0 + $0x1c] sm:$0xf]
    %v30 = vld [vmem:[%s0 + $0x20] sm:$0xf]
    %v31 = vld [vmem:[%s0 + $0x24] sm:$0xf]
    %v32 = vld [vmem:[%s0 + $0x28] sm:$0xf]
    %v33 = vld [vmem:[%s0 + $0x2c] sm:$0xf]
    %v34 = vld [vmem:[%s0 + $0x30] sm:$0xf]
    %v35 = vld [vmem:[%s0 + $0x34] sm:$0xf]
    %v36 = vld [vmem:[%s0 + $0x38] sm:$0xf]
    %v37 = vld [vmem:[%s0 + $0x3c] sm:$0xf]
    %v38 = vld [vmem:[%s0 + $0x40] sm:$0xf]
    %v39 = vld [vmem:[%s0 + $0x44] sm:$0xf]
    %v40 = vld [vmem:[%s0 + $0x48] sm:$0xf]
    %v41 = vld [vmem:[%s0 + $0x4c] sm:$0xf]
    %v42 = vld [vmem:[%s0 + $0x50] sm:$0xf]
    %v43 = vld [vmem:[%s0 + $0x54] sm:$0xf]
    %v44 = vld [vmem:[%s0 + $0x58] sm:$0xf]
    %v45 = vld [vmem:[%s0 + $0x5c] sm:$0xf]
    %v46 = vld [vmem:[%s0 + $0x60] sm:$0xf]
    %v47 = vld [vmem:[%s0 + $0x64] sm:$0xf]
    %v48 = vld [vmem:[%s0 + $0x68] sm:$0xf]
    %v49 = vld [vmem:[%s0 + $0x6c] sm:$0xf]
    %v50 = vld [vmem:[%s0 + $0x70] sm:$0xf]
    %v51 = vld [vmem:[%s0 + $0x74] sm:$0xf]
    %v52 = vld [vmem:[%s0 + $0x78] sm:$0xf]
    %v53 = vld [vmem:[%s0 + $0x7c] sm:$0xf]
    %v54 = vld [vmem:[%s0 + $0x80] sm:$0xf]
    %v55 = vld [vmem:[%s0 + $0x84] sm:$0xf]
    %v56 = vld [vmem:[%s0 + $0x88] sm:$0xf]
    %v57 = vld [vmem:[%s0 + $0x8c] sm:$0xf]
    %v58 = vld [vmem:[%s0 + $0x90] sm:$0xf]
    %v59 = vld [vmem:[%s0 + $0x94] sm:$0xf]
    %v60 = vld [vmem:[%s0 + $0x98] sm:$0xf]
    %v61 = vld [vmem:[%s0 + $0x9c] sm:$0xf]
    %v62 = vld [vmem:[%s0 + $0xa0] sm:$0xf]
    %v63 = vld [vmem:[%s0 + $0xa4] sm:$0xf]
    %v64 = vld [vmem:[%s0 + $0xa8] sm:$0xf]
    %v65 = vld [vmem:[%s0 + $0xac] sm:$0xf]
    %v66 = vld [vmem:[%s0 + $0xb0] sm:$0xf]
    %v67 = vld [vmem:[%s0 + $0xb4] sm:$0xf]
    %v68 = vld [vmem:[%s0 + $0xb8] sm:$0xf]
    %v69 = vld [vmem:[%s0 + $0xbc] sm:$0xf]
    %v70 = vld [vmem:[%s0 + $0xc0] sm:$0xf]
    %v71 = vld [vmem:[%s0 + $0xc4] sm:$0xf]
    %v72 = vld [vmem:[%s0 + $0xc8] sm:$0xf]
    %v73 = vld [vmem:[%s0 + $0xcc] sm:$0xf]
    %v74 = vld [vmem:[%s0 + $0xd0] sm:$0xf]
    %v75 = vld [vmem:[%s0 + $0xd4] sm:$0xf]
    %v76 = vld [vmem:[%s0 + $0xd8] sm:$0xf]
    %v77 = vld [vmem:[%s0 + $0xdc] sm:$0xf]
    %v78 = vld [vmem:[%s0 + $0xe0] sm:$0xf]
    %v79 = vld [vmem:[%s0 + $0xe4] sm:$0xf]
    %v80 = vld [vmem:[%s0 + $0xe8] sm:$0xf]
    %v81 = vld [vmem:[%s0 + $0xec] sm:$0xf]
    %v82 = vld [vmem:[%s0 + $0xf0] sm:$0xf]
    %v83 = vld [vmem:[%s0 + $0xf4] sm:$0xf]
    %v84 = vld [vmem:[%s0 + $0xf8] sm:$0xf]
    %v85 = vld [vmem:[%s0 + $0xfc] sm:$0xf]
    %v86 = vld [vmem:[%s2] sm:$0x3]
    %v151 = vunpack.c.l.b16 %v22
    %v152 = vunpack.c.l.b16 %v23
    %v153 = vunpack.c.l.b16 %v24
    %v154 = vunpack.c.l.b16 %v25
    %v155 = vunpack.c.l.b16 %v26
    %v156 = vunpack.c.l.b16 %v27
    %v157 = vunpack.c.l.b16 %v28
    %v158 = vunpack.c.l.b16 %v29
    %v159 = vunpack.c.l.b16 %v30
    %v160 = vunpack.c.l.b16 %v31
    %v161 = vunpack.c.l.b16 %v32
    %v162 = vunpack.c.l.b16 %v33
    %v163 = vunpack.c.l.b16 %v34
    %v164 = vunpack.c.l.b16 %v35
    %v165 = vunpack.c.l.b16 %v36
    %v166 = vunpack.c.l.b16 %v37
    %v167 = vunpack.c.l.b16 %v38
    %v168 = vunpack.c.l.b16 %v39
    %v169 = vunpack.c.l.b16 %v40
    %v170 = vunpack.c.l.b16 %v41
    %v171 = vunpack.c.l.b16 %v42
    %v172 = vunpack.c.l.b16 %v43
    %v173 = vunpack.c.l.b16 %v44
    %v174 = vunpack.c.l.b16 %v45
    %v175 = vunpack.c.l.b16 %v46
    %v176 = vunpack.c.l.b16 %v47
    %v177 = vunpack.c.l.b16 %v48
    %v178 = vunpack.c.l.b16 %v49
    %v179 = vunpack.c.l.b16 %v50
    %v180 = vunpack.c.l.b16 %v51
    %v181 = vunpack.c.l.b16 %v52
    %v182 = vunpack.c.l.b16 %v53
    %v183 = vunpack.c.l.b16 %v54
    %v184 = vunpack.c.l.b16 %v55
    %v185 = vunpack.c.l.b16 %v56
    %v186 = vunpack.c.l.b16 %v57
    %v187 = vunpack.c.l.b16 %v58
    %v188 = vunpack.c.l.b16 %v59
    %v189 = vunpack.c.l.b16 %v60
    %v190 = vunpack.c.l.b16 %v61
    %v191 = vunpack.c.l.b16 %v62
    %v192 = vunpack.c.l.b16 %v63
    %v193 = vunpack.c.l.b16 %v64
    %v194 = vunpack.c.l.b16 %v65
    %v195 = vunpack.c.l.b16 %v66
    %v196 = vunpack.c.l.b16 %v67
    %v197 = vunpack.c.l.b16 %v68
    %v198 = vunpack.c.l.b16 %v69
    %v199 = vunpack.c.l.b16 %v70
    %v200 = vunpack.c.l.b16 %v71
    %v201 = vunpack.c.l.b16 %v72
    %v202 = vunpack.c.l.b16 %v73
    %v203 = vunpack.c.l.b16 %v74
    %v204 = vunpack.c.l.b16 %v75
    %v205 = vunpack.c.l.b16 %v76
    %v206 = vunpack.c.l.b16 %v77
    %v207 = vunpack.c.l.b16 %v78
    %v208 = vunpack.c.l.b16 %v79
    %v209 = vunpack.c.l.b16 %v80
    %v210 = vunpack.c.l.b16 %v81
    %v211 = vunpack.c.l.b16 %v82
    %v212 = vunpack.c.l.b16 %v83
    %v213 = vunpack.c.l.b16 %v84
    %v214 = vunpack.c.l.b16 %v85
    %v215 = vpack.c.b16 %v152, %v151
    %v216 = vpack.c.b16 %v154, %v153
    %v217 = vpack.c.b16 %v156, %v155
    %v218 = vpack.c.b16 %v158, %v157
    %v219 = vpack.c.b16 %v160, %v159
    %v220 = vpack.c.b16 %v162, %v161
    %v221 = vpack.c.b16 %v164, %v163
    %v222 = vpack.c.b16 %v166, %v165
    %v223 = vpack.c.b16 %v168, %v167
    %v224 = vpack.c.b16 %v170, %v169
    %v225 = vpack.c.b16 %v172, %v171
    %v226 = vpack.c.b16 %v174, %v173
    %v227 = vpack.c.b16 %v176, %v175
    %v228 = vpack.c.b16 %v178, %v177
    %v229 = vpack.c.b16 %v180, %v179
    %v230 = vpack.c.b16 %v182, %v181
    %v231 = vpack.c.b16 %v184, %v183
    %v232 = vpack.c.b16 %v186, %v185
    %v233 = vpack.c.b16 %v188, %v187
    %v234 = vpack.c.b16 %v190, %v189
    %v235 = vpack.c.b16 %v192, %v191
    %v236 = vpack.c.b16 %v194, %v193
    %v237 = vpack.c.b16 %v196, %v195
    %v238 = vpack.c.b16 %v198, %v197
    %v239 = vpack.c.b16 %v200, %v199
    %v240 = vpack.c.b16 %v202, %v201
    %v241 = vpack.c.b16 %v204, %v203
    %v242 = vpack.c.b16 %v206, %v205
    %v243 = vpack.c.b16 %v208, %v207
    %v244 = vpack.c.b16 %v210, %v209
    %v245 = vpack.c.b16 %v212, %v211
    %v246 = vpack.c.b16 %v214, %v213
    %vm247 = vcmask 31744
    %v249 = vsel %vm247, %v215, 0
    %v252 = vsel %vm247, %v216, 0
    %v255 = vsel %vm247, %v217, 0
    %v258 = vsel %vm247, %v218, 0
    %v261 = vsel %vm247, %v219, 0
    %v264 = vsel %vm247, %v220, 0
    %v267 = vsel %vm247, %v221, 0
    %v270 = vsel %vm247, %v222, 0
    %v273 = vsel %vm247, %v223, 0
    %v276 = vsel %vm247, %v224, 0
    %v279 = vsel %vm247, %v225, 0
    %v282 = vsel %vm247, %v226, 0
    %v285 = vsel %vm247, %v227, 0
    %v288 = vsel %vm247, %v228, 0
    %v291 = vsel %vm247, %v229, 0
    %v294 = vsel %vm247, %v230, 0
    %v297 = vsel %vm247, %v231, 0
    %v300 = vsel %vm247, %v232, 0
    %v303 = vsel %vm247, %v233, 0
    %v306 = vsel %vm247, %v234, 0
    %v309 = vsel %vm247, %v235, 0
    %v312 = vsel %vm247, %v236, 0
    %v315 = vsel %vm247, %v237, 0
    %v318 = vsel %vm247, %v238, 0
    %v321 = vsel %vm247, %v239, 0
    %v324 = vsel %vm247, %v240, 0
    %v327 = vsel %vm247, %v241, 0
    %v330 = vsel %vm247, %v242, 0
    %v333 = vsel %vm247, %v243, 0
    %v336 = vsel %vm247, %v244, 0
    %v339 = vsel %vm247, %v245, 0
    %v342 = vsel %vm247, %v246, 0
    %vm344 = vcmask 1041408
    %v346 = vsel %vm344, %v86, 0
    %348 = vmatprep.subr.bf16.mxu0 0
    %349 = vmatpush1.bf16.msra.mxu0 %v346
    %350 = vmatprep.subr.bf16.mxu0 0
    %351 = vmatpush1.bf16.msra.mxu0 0
    %352 = vmatprep.subr.bf16.mxu0 0
    %353 = vmatpush1.bf16.msra.mxu0 0
    %354 = vmatprep.subr.bf16.mxu0 0
    %355 = vmatpush1.bf16.msra.mxu0 0
    %356 = vmatprep.subr.bf16.mxu0 0
    %357 = vmatpush1.bf16.msra.mxu0 0
    %358 = vmatprep.subr.bf16.mxu0 0
    %359 = vmatpush1.bf16.msra.mxu0 0
    %360 = vmatprep.subr.bf16.mxu0 0
    %361 = vmatpush1.bf16.msra.mxu0 0
    %362 = vmatprep.subr.bf16.mxu0 0
    %363 = vmatpush1.bf16.msra.mxu0 0
    %364 = vmatprep.subr.bf16.mxu0 0
    %365 = vmatpush1.bf16.msra.mxu0 0
    %366 = vmatprep.subr.bf16.mxu0 0
    %367 = vmatpush1.bf16.msra.mxu0 0
    %368 = vmatprep.subr.bf16.mxu0 0
    %369 = vmatpush1.bf16.msra.mxu0 0
    %370 = vmatprep.subr.bf16.mxu0 0
    %371 = vmatpush1.bf16.msra.mxu0 0
    %372 = vmatprep.subr.bf16.mxu0 0
    %373 = vmatpush1.bf16.msra.mxu0 0
    %374 = vmatprep.subr.bf16.mxu0 0
    %375 = vmatpush1.bf16.msra.mxu0 0
    %376 = vmatprep.subr.bf16.mxu0 0
    %377 = vmatpush1.bf16.msra.mxu0 0
    %378 = vmatprep.subr.bf16.mxu0 0
    %379 = vmatpush1.bf16.msra.mxu0 0
    %380 = vmatprep.mubr.bf16.mxu0 0
    %381 = vmatmul.mubr.bf16.gmra.mrb[0].mxu0 %v249
    %v382 = vpop.f32.mrb[0].mxu0
    %v383 = vadd.f32 0.0, %v382
    %v384 = vpop.f32.mrb[0].mxu0
    %v385 = vpop.f32.mrb[0].mxu0
    %v386 = vadd.f32 0.0, %v385
    %v387 = vpop.f32.mrb[0].mxu0
    %388 = vmatprep.mubr.bf16.mxu0 0
    %389 = vmatmul.mubr.bf16.gmra.mrb[0].mxu0 %v252
    %v390 = vpop.f32.mrb[0].mxu0
    %v391 = vadd.f32 0.0, %v390
    %v392 = vpop.f32.mrb[0].mxu0
    %v393 = vpop.f32.mrb[0].mxu0
    %v394 = vadd.f32 0.0, %v393
    %v395 = vpop.f32.mrb[0].mxu0
    %396 = vmatprep.mubr.bf16.mxu0 0
    %397 = vmatmul.mubr.bf16.gmra.mrb[0].mxu0 %v255
    %v398 = vpop.f32.mrb[0].mxu0
    %v399 = vadd.f32 0.0, %v398
    %v400 = vpop.f32.mrb[0].mxu0
    %v401 = vpop.f32.mrb[0].mxu0
    %v402 = vadd.f32 0.0, %v401
    %v403 = vpop.f32.mrb[0].mxu0
    %404 = vmatprep.mubr.bf16.mxu0 0
    %405 = vmatmul.mubr.bf16.gmra.mrb[0].mxu0 %v258
    %v406 = vpop.f32.mrb[0].mxu0
    %v407 = vadd.f32 0.0, %v406
    %v408 = vpop.f32.mrb[0].mxu0
    %v409 = vpop.f32.mrb[0].mxu0
    %v410 = vadd.f32 0.0, %v409
    %v411 = vpop.f32.mrb[0].mxu0
    %412 = vmatprep.mubr.bf16.mxu0 0
    %413 = vmatmul.mubr.bf16.gmra.mrb[0].mxu0 %v261
    %v414 = vpop.f32.mrb[0].mxu0
    %v415 = vadd.f32 0.0, %v414
    %v416 = vpop.f32.mrb[0].mxu0
    %v417 = vpop.f32.mrb[0].mxu0
    %v418 = vadd.f32 0.0, %v417
    %v419 = vpop.f32.mrb[0].mxu0
    %420 = vmatprep.mubr.bf16.mxu0 0
    %421 = vmatmul.mubr.bf16.gmra.mrb[0].mxu0 %v264
    %v422 = vpop.f32.mrb[0].mxu0
    %v423 = vadd.f32 0.0, %v422
    %v424 = vpop.f32.mrb[0].mxu0
    %v425 = vpop.f32.mrb[0].mxu0
    %v426 = vadd.f32 0.0, %v425
    %v427 = vpop.f32.mrb[0].mxu0
    %428 = vmatprep.mubr.bf16.mxu0 0
    %429 = vmatmul.mubr.bf16.gmra.mrb[0].mxu0 %v267
    %v430 = vpop.f32.mrb[0].mxu0
    %v431 = vadd.f32 0.0, %v430
    %v432 = vpop.f32.mrb[0].mxu0
    %v433 = vpop.f32.mrb[0].mxu0
    %v434 = vadd.f32 0.0, %v433
    %v435 = vpop.f32.mrb[0].mxu0
    %436 = vmatprep.mubr.bf16.mxu0 0
    %437 = vmatmul.mubr.bf16.gmra.mrb[0].mxu0 %v270
    %v438 = vpop.f32.mrb[0].mxu0
    %v439 = vadd.f32 0.0, %v438
    %v440 = vpop.f32.mrb[0].mxu0
    %v441 = vpop.f32.mrb[0].mxu0
    %v442 = vadd.f32 0.0, %v441
    %v443 = vpop.f32.mrb[0].mxu0
    %444 = vmatprep.mubr.bf16.mxu0 0
    %445 = vmatmul.mubr.bf16.gmra.mrb[0].mxu0 %v273
    %v446 = vpop.f32.mrb[0].mxu0
    %v447 = vadd.f32 0.0, %v446
    %v448 = vpop.f32.mrb[0].mxu0
    %v449 = vpop.f32.mrb[0].mxu0
    %v450 = vadd.f32 0.0, %v449
    %v451 = vpop.f32.mrb[0].mxu0
    %452 = vmatprep.mubr.bf16.mxu0 0
    %453 = vmatmul.mubr.bf16.gmra.mrb[0].mxu0 %v276
    %v454 = vpop.f32.mrb[0].mxu0
    %v455 = vadd.f32 0.0, %v454
    %v456 = vpop.f32.mrb[0].mxu0
    %v457 = vpop.f32.mrb[0].mxu0
    %v458 = vadd.f32 0.0, %v457
    %v459 = vpop.f32.mrb[0].mxu0
    %460 = vmatprep.mubr.bf16.mxu0 0
    %461 = vmatmul.mubr.bf16.gmra.mrb[0].mxu0 %v279
    %v462 = vpop.f32.mrb[0].mxu0
    %v463 = vadd.f32 0.0, %v462
    %v464 = vpop.f32.mrb[0].mxu0
    %v465 = vpop.f32.mrb[0].mxu0
    %v466 = vadd.f32 0.0, %v465
    %v467 = vpop.f32.mrb[0].mxu0
    %468 = vmatprep.mubr.bf16.mxu0 0
    %469 = vmatmul.mubr.bf16.gmra.mrb[0].mxu0 %v282
    %v470 = vpop.f32.mrb[0].mxu0
    %v471 = vadd.f32 0.0, %v470
    %v472 = vpop.f32.mrb[0].mxu0
    %v473 = vpop.f32.mrb[0].mxu0
    %v474 = vadd.f32 0.0, %v473
    %v475 = vpop.f32.mrb[0].mxu0
    %476 = vmatprep.mubr.bf16.mxu0 0
    %477 = vmatmul.mubr.bf16.gmra.mrb[0].mxu0 %v285
    %v478 = vpop.f32.mrb[0].mxu0
    %v479 = vadd.f32 0.0, %v478
    %v480 = vpop.f32.mrb[0].mxu0
    %v481 = vpop.f32.mrb[0].mxu0
    %v482 = vadd.f32 0.0, %v481
    %v483 = vpop.f32.mrb[0].mxu0
    %484 = vmatprep.mubr.bf16.mxu0 0
    %485 = vmatmul.mubr.bf16.gmra.mrb[0].mxu0 %v288
    %v486 = vpop.f32.mrb[0].mxu0
    %v487 = vadd.f32 0.0, %v486
    %v488 = vpop.f32.mrb[0].mxu0
    %v489 = vpop.f32.mrb[0].mxu0
    %v490 = vadd.f32 0.0, %v489
    %v491 = vpop.f32.mrb[0].mxu0
    %492 = vmatprep.mubr.bf16.mxu0 0
    %493 = vmatmul.mubr.bf16.gmra.mrb[0].mxu0 %v291
    %v494 = vpop.f32.mrb[0].mxu0
    %v495 = vadd.f32 0.0, %v494
    %v496 = vpop.f32.mrb[0].mxu0
    %v497 = vpop.f32.mrb[0].mxu0
    %v498 = vadd.f32 0.0, %v497
    %v499 = vpop.f32.mrb[0].mxu0
    %500 = vmatprep.mubr.bf16.mxu0 0
    %501 = vmatmul.mubr.bf16.gmra.mrb[0].mxu0 %v294
    %v502 = vpop.f32.mrb[0].mxu0
    %v503 = vadd.f32 0.0, %v502
    %v504 = vpop.f32.mrb[0].mxu0
    %v505 = vpop.f32.mrb[0].mxu0
    %v506 = vadd.f32 0.0, %v505
    %v507 = vpop.f32.mrb[0].mxu0
    %508 = vmatprep.mubr.bf16.mxu0 0
    %509 = vmatmul.mubr.bf16.gmra.mrb[0].mxu0 %v297
    %v510 = vpop.f32.mrb[0].mxu0
    %v511 = vadd.f32 0.0, %v510
    %v512 = vpop.f32.mrb[0].mxu0
    %v513 = vpop.f32.mrb[0].mxu0
    %v514 = vadd.f32 0.0, %v513
    %v515 = vpop.f32.mrb[0].mxu0
    %516 = vmatprep.mubr.bf16.mxu0 0
    %517 = vmatmul.mubr.bf16.gmra.mrb[0].mxu0 %v300
    %v518 = vpop.f32.mrb[0].mxu0
    %v519 = vadd.f32 0.0, %v518
    %v520 = vpop.f32.mrb[0].mxu0
    %v521 = vpop.f32.mrb[0].mxu0
    %v522 = vadd.f32 0.0, %v521
    %v523 = vpop.f32.mrb[0].mxu0
    %524 = vmatprep.mubr.bf16.mxu0 0
    %525 = vmatmul.mubr.bf16.gmra.mrb[0].mxu0 %v303
    %v526 = vpop.f32.mrb[0].mxu0
    %v527 = vadd.f32 0.0, %v526
    %v528 = vpop.f32.mrb[0].mxu0
    %v529 = vpop.f32.mrb[0].mxu0
    %v530 = vadd.f32 0.0, %v529
    %v531 = vpop.f32.mrb[0].mxu0
    %532 = vmatprep.mubr.bf16.mxu0 0
    %533 = vmatmul.mubr.bf16.gmra.mrb[0].mxu0 %v306
    %v534 = vpop.f32.mrb[0].mxu0
    %v535 = vadd.f32 0.0, %v534
    %v536 = vpop.f32.mrb[0].mxu0
    %v537 = vpop.f32.mrb[0].mxu0
    %v538 = vadd.f32 0.0, %v537
    %v539 = vpop.f32.mrb[0].mxu0
    %540 = vmatprep.mubr.bf16.mxu0 0
    %541 = vmatmul.mubr.bf16.gmra.mrb[0].mxu0 %v309
    %v542 = vpop.f32.mrb[0].mxu0
    %v543 = vadd.f32 0.0, %v542
    %v544 = vpop.f32.mrb[0].mxu0
    %v545 = vpop.f32.mrb[0].mxu0
    %v546 = vadd.f32 0.0, %v545
    %v547 = vpop.f32.mrb[0].mxu0
    %548 = vmatprep.mubr.bf16.mxu0 0
    %549 = vmatmul.mubr.bf16.gmra.mrb[0].mxu0 %v312
    %v550 = vpop.f32.mrb[0].mxu0
    %v551 = vadd.f32 0.0, %v550
    %v552 = vpop.f32.mrb[0].mxu0
    %v553 = vpop.f32.mrb[0].mxu0
    %v554 = vadd.f32 0.0, %v553
    %v555 = vpop.f32.mrb[0].mxu0
    %556 = vmatprep.mubr.bf16.mxu0 0
    %557 = vmatmul.mubr.bf16.gmra.mrb[0].mxu0 %v315
    %v558 = vpop.f32.mrb[0].mxu0
    %v559 = vadd.f32 0.0, %v558
    %v560 = vpop.f32.mrb[0].mxu0
    %v561 = vpop.f32.mrb[0].mxu0
    %v562 = vadd.f32 0.0, %v561
    %v563 = vpop.f32.mrb[0].mxu0
    %564 = vmatprep.mubr.bf16.mxu0 0
    %565 = vmatmul.mubr.bf16.gmra.mrb[0].mxu0 %v318
    %v566 = vpop.f32.mrb[0].mxu0
    %v567 = vadd.f32 0.0, %v566
    %v568 = vpop.f32.mrb[0].mxu0
    %v569 = vpop.f32.mrb[0].mxu0
    %v570 = vadd.f32 0.0, %v569
    %v571 = vpop.f32.mrb[0].mxu0
    %572 = vmatprep.mubr.bf16.mxu0 0
    %573 = vmatmul.mubr.bf16.gmra.mrb[0].mxu0 %v321
    %v574 = vpop.f32.mrb[0].mxu0
    %v575 = vadd.f32 0.0, %v574
    %v576 = vpop.f32.mrb[0].mxu0
    %v577 = vpop.f32.mrb[0].mxu0
    %v578 = vadd.f32 0.0, %v577
    %v579 = vpop.f32.mrb[0].mxu0
    %580 = vmatprep.mubr.bf16.mxu0 0
    %581 = vmatmul.mubr.bf16.gmra.mrb[0].mxu0 %v324
    %v582 = vpop.f32.mrb[0].mxu0
    %v583 = vadd.f32 0.0, %v582
    %v584 = vpop.f32.mrb[0].mxu0
    %v585 = vpop.f32.mrb[0].mxu0
    %v586 = vadd.f32 0.0, %v585
    %v587 = vpop.f32.mrb[0].mxu0
    %588 = vmatprep.mubr.bf16.mxu0 0
    %589 = vmatmul.mubr.bf16.gmra.mrb[0].mxu0 %v327
    %v590 = vpop.f32.mrb[0].mxu0
    %v591 = vadd.f32 0.0, %v590
    %v592 = vpop.f32.mrb[0].mxu0
    %v593 = vpop.f32.mrb[0].mxu0
    %v594 = vadd.f32 0.0, %v593
    %v595 = vpop.f32.mrb[0].mxu0
    %596 = vmatprep.mubr.bf16.mxu0 0
    %597 = vmatmul.mubr.bf16.gmra.mrb[0].mxu0 %v330
    %v598 = vpop.f32.mrb[0].mxu0
    %v599 = vadd.f32 0.0, %v598
    %v600 = vpop.f32.mrb[0].mxu0
    %v601 = vpop.f32.mrb[0].mxu0
    %v602 = vadd.f32 0.0, %v601
    %v603 = vpop.f32.mrb[0].mxu0
    %604 = vmatprep.mubr.bf16.mxu0 0
    %605 = vmatmul.mubr.bf16.gmra.mrb[0].mxu0 %v333
    %v606 = vpop.f32.mrb[0].mxu0
    %v607 = vadd.f32 0.0, %v606
    %v608 = vpop.f32.mrb[0].mxu0
    %v609 = vpop.f32.mrb[0].mxu0
    %v610 = vadd.f32 0.0, %v609
    %v611 = vpop.f32.mrb[0].mxu0
    %612 = vmatprep.mubr.bf16.mxu0 0
    %613 = vmatmul.mubr.bf16.gmra.mrb[0].mxu0 %v336
    %v614 = vpop.f32.mrb[0].mxu0
    %v615 = vadd.f32 0.0, %v614
    %v616 = vpop.f32.mrb[0].mxu0
    %v617 = vpop.f32.mrb[0].mxu0
    %v618 = vadd.f32 0.0, %v617
    %v619 = vpop.f32.mrb[0].mxu0
    %620 = vmatprep.mubr.bf16.mxu0 0
    %621 = vmatmul.mubr.bf16.gmra.mrb[0].mxu0 %v339
    %v622 = vpop.f32.mrb[0].mxu0
    %v623 = vadd.f32 0.0, %v622
    %v624 = vpop.f32.mrb[0].mxu0
    %v625 = vpop.f32.mrb[0].mxu0
    %v626 = vadd.f32 0.0, %v625
    %v627 = vpop.f32.mrb[0].mxu0
    %628 = vmatprep.mubr.bf16.mxu0 0
    %629 = vmatmul.mubr.bf16.gmra.mrb[0].mxu0 %v342
    %v630 = vpop.f32.mrb[0].mxu0
    %v631 = vadd.f32 0.0, %v630
    %v632 = vpop.f32.mrb[0].mxu0
    %v633 = vpop.f32.mrb[0].mxu0
    %v634 = vadd.f32 0.0, %v633
    %v635 = vpop.f32.mrb[0].mxu0
    %636 = vdwg.mxu0
    %v637 = vsub.f32 0.0, %v383
    %v638 = vsub.f32 0.0, %v386
    %v639 = vsub.f32 0.0, %v391
    %v640 = vsub.f32 0.0, %v394
    %v641 = vsub.f32 0.0, %v399
    %v642 = vsub.f32 0.0, %v402
    %v643 = vsub.f32 0.0, %v407
    %v644 = vsub.f32 0.0, %v410
    %v645 = vsub.f32 0.0, %v415
    %v646 = vsub.f32 0.0, %v418
    %v647 = vsub.f32 0.0, %v423
    %v648 = vsub.f32 0.0, %v426
    %v649 = vsub.f32 0.0, %v431
    %v650 = vsub.f32 0.0, %v434
    %v651 = vsub.f32 0.0, %v439
    %v652 = vsub.f32 0.0, %v442
    %v653 = vsub.f32 0.0, %v447
    %v654 = vsub.f32 0.0, %v450
    %v655 = vsub.f32 0.0, %v455
    %v656 = vsub.f32 0.0, %v458
    %v657 = vsub.f32 0.0, %v463
    %v658 = vsub.f32 0.0, %v466
    %v659 = vsub.f32 0.0, %v471
    %v660 = vsub.f32 0.0, %v474
    %v661 = vsub.f32 0.0, %v479
    %v662 = vsub.f32 0.0, %v482
    %v663 = vsub.f32 0.0, %v487
    %v664 = vsub.f32 0.0, %v490
    %v665 = vsub.f32 0.0, %v495
    %v666 = vsub.f32 0.0, %v498
    %v667 = vsub.f32 0.0, %v503
    %v668 = vsub.f32 0.0, %v506
    %v669 = vsub.f32 0.0, %v511
    %v670 = vsub.f32 0.0, %v514
    %v671 = vsub.f32 0.0, %v519
    %v672 = vsub.f32 0.0, %v522
    %v673 = vsub.f32 0.0, %v527
    %v674 = vsub.f32 0.0, %v530
    %v675 = vsub.f32 0.0, %v535
    %v676 = vsub.f32 0.0, %v538
    %v677 = vsub.f32 0.0, %v543
    %v678 = vsub.f32 0.0, %v546
    %v679 = vsub.f32 0.0, %v551
    %v680 = vsub.f32 0.0, %v554
    %v681 = vsub.f32 0.0, %v559
    %v682 = vsub.f32 0.0, %v562
    %v683 = vsub.f32 0.0, %v567
    %v684 = vsub.f32 0.0, %v570
    %v685 = vsub.f32 0.0, %v575
    %v686 = vsub.f32 0.0, %v578
    %v687 = vsub.f32 0.0, %v583
    %v688 = vsub.f32 0.0, %v586
    %v689 = vsub.f32 0.0, %v591
    %v690 = vsub.f32 0.0, %v594
    %v691 = vsub.f32 0.0, %v599
    %v692 = vsub.f32 0.0, %v602
    %v693 = vsub.f32 0.0, %v607
    %v694 = vsub.f32 0.0, %v610
    %v695 = vsub.f32 0.0, %v615
    %v696 = vsub.f32 0.0, %v618
    %v697 = vsub.f32 0.0, %v623
    %v698 = vsub.f32 0.0, %v626
    %v699 = vsub.f32 0.0, %v631
    %v700 = vsub.f32 0.0, %v634
    %v701 = vmul.f32 %v637, 1.442695
    %v702 = vpow.pop %v701
    %v703 = vmul.f32 %v638, 1.442695
    %v704 = vpow.pop %v703
    %v705 = vmul.f32 %v639, 1.442695
    %v706 = vpow.pop %v705
    %v707 = vmul.f32 %v640, 1.442695
    %v708 = vpow.pop %v707
    %v709 = vmul.f32 %v641, 1.442695
    %v710 = vpow.pop %v709
    %v711 = vmul.f32 %v642, 1.442695
    %v712 = vpow.pop %v711
    %v713 = vmul.f32 %v643, 1.442695
    %v714 = vpow.pop %v713
    %v715 = vmul.f32 %v644, 1.442695
    %v716 = vpow.pop %v715
    %v717 = vmul.f32 %v645, 1.442695
    %v718 = vpow.pop %v717
    %v719 = vmul.f32 %v646, 1.442695
    %v720 = vpow.pop %v719
    %v721 = vmul.f32 %v647, 1.442695
    %v722 = vpow.pop %v721
    %v723 = vmul.f32 %v648, 1.442695
    %v724 = vpow.pop %v723
    %v725 = vmul.f32 %v649, 1.442695
    %v726 = vpow.pop %v725
    %v727 = vmul.f32 %v650, 1.442695
    %v728 = vpow.pop %v727
    %v729 = vmul.f32 %v651, 1.442695
    %v730 = vpow.pop %v729
    %v731 = vmul.f32 %v652, 1.442695
    %v732 = vpow.pop %v731
    %v733 = vmul.f32 %v653, 1.442695
    %v734 = vpow.pop %v733
    %v735 = vmul.f32 %v654, 1.442695
    %v736 = vpow.pop %v735
    %v737 = vmul.f32 %v655, 1.442695
    %v738 = vpow.pop %v737
    %v739 = vmul.f32 %v656, 1.442695
    %v740 = vpow.pop %v739
    %v741 = vmul.f32 %v657, 1.442695
    %v742 = vpow.pop %v741
    %v743 = vmul.f32 %v658, 1.442695
    %v744 = vpow.pop %v743
    %v745 = vmul.f32 %v659, 1.442695
    %v746 = vpow.pop %v745
    %v747 = vmul.f32 %v660, 1.442695
    %v748 = vpow.pop %v747
    %v749 = vmul.f32 %v661, 1.442695
    %v750 = vpow.pop %v749
    %v751 = vmul.f32 %v662, 1.442695
    %v752 = vpow.pop %v751
    %v753 = vmul.f32 %v663, 1.442695
    %v754 = vpow.pop %v753
    %v755 = vmul.f32 %v664, 1.442695
    %v756 = vpow.pop %v755
    %v757 = vmul.f32 %v665, 1.442695
    %v758 = vpow.pop %v757
    %v759 = vmul.f32 %v666, 1.442695
    %v760 = vpow.pop %v759
    %v761 = vmul.f32 %v667, 1.442695
    %v762 = vpow.pop %v761
    %v763 = vmul.f32 %v668, 1.442695
    %v764 = vpow.pop %v763
    %v765 = vmul.f32 %v669, 1.442695
    %v766 = vpow.pop %v765
    %v767 = vmul.f32 %v670, 1.442695
    %v768 = vpow.pop %v767
    %v769 = vmul.f32 %v671, 1.442695
    %v770 = vpow.pop %v769
    %v771 = vmul.f32 %v672, 1.442695
    %v772 = vpow.pop %v771
    %v773 = vmul.f32 %v673, 1.442695
    %v774 = vpow.pop %v773
    %v775 = vmul.f32 %v674, 1.442695
    %v776 = vpow.pop %v775
    %v777 = vmul.f32 %v675, 1.442695
    %v778 = vpow.pop %v777
    %v779 = vmul.f32 %v676, 1.442695
    %v780 = vpow.pop %v779
    %v781 = vmul.f32 %v677, 1.442695
    %v782 = vpow.pop %v781
    %v783 = vmul.f32 %v678, 1.442695
    %v784 = vpow.pop %v783
    %v785 = vmul.f32 %v679, 1.442695
    %v786 = vpow.pop %v785
    %v787 = vmul.f32 %v680, 1.442695
    %v788 = vpow.pop %v787
    %v789 = vmul.f32 %v681, 1.442695
    %v790 = vpow.pop %v789
    %v791 = vmul.f32 %v682, 1.442695
    %v792 = vpow.pop %v791
    %v793 = vmul.f32 %v683, 1.442695
    %v794 = vpow.pop %v793
    %v795 = vmul.f32 %v684, 1.442695
    %v796 = vpow.pop %v795
    %v797 = vmul.f32 %v685, 1.442695
    %v798 = vpow.pop %v797
    %v799 = vmul.f32 %v686, 1.442695
    %v800 = vpow.pop %v799
    %v801 = vmul.f32 %v687, 1.442695
    %v802 = vpow.pop %v801
    %v803 = vmul.f32 %v688, 1.442695
    %v804 = vpow.pop %v803
    %v805 = vmul.f32 %v689, 1.442695
    %v806 = vpow.pop %v805
    %v807 = vmul.f32 %v690, 1.442695
    %v808 = vpow.pop %v807
    %v809 = vmul.f32 %v691, 1.442695
    %v810 = vpow.pop %v809
    %v811 = vmul.f32 %v692, 1.442695
    %v812 = vpow.pop %v811
    %v813 = vmul.f32 %v693, 1.442695
    %v814 = vpow.pop %v813
    %v815 = vmul.f32 %v694, 1.442695
    %v816 = vpow.pop %v815
    %v817 = vmul.f32 %v695, 1.442695
    %v818 = vpow.pop %v817
    %v819 = vmul.f32 %v696, 1.442695
    %v820 = vpow.pop %v819
    %v821 = vmul.f32 %v697, 1.442695
    %v822 = vpow.pop %v821
    %v823 = vmul.f32 %v698, 1.442695
    %v824 = vpow.pop %v823
    %v825 = vmul.f32 %v699, 1.442695
    %v826 = vpow.pop %v825
    %v827 = vmul.f32 %v700, 1.442695
    %v828 = vpow.pop %v827
    %v829 = vadd.f32 %v702, 1.0
    %v830 = vadd.f32 %v704, 1.0
    %v831 = vadd.f32 %v706, 1.0
    %v832 = vadd.f32 %v708, 1.0
    %v833 = vadd.f32 %v710, 1.0
    %v834 = vadd.f32 %v712, 1.0
    %v835 = vadd.f32 %v714, 1.0
    %v836 = vadd.f32 %v716, 1.0
    %v837 = vadd.f32 %v718, 1.0
    %v838 = vadd.f32 %v720, 1.0
    %v839 = vadd.f32 %v722, 1.0
    %v840 = vadd.f32 %v724, 1.0
    %v841 = vadd.f32 %v726, 1.0
    %v842 = vadd.f32 %v728, 1.0
    %v843 = vadd.f32 %v730, 1.0
    %v844 = vadd.f32 %v732, 1.0
    %v845 = vadd.f32 %v734, 1.0
    %v846 = vadd.f32 %v736, 1.0
    %v847 = vadd.f32 %v738, 1.0
    %v848 = vadd.f32 %v740, 1.0
    %v849 = vadd.f32 %v742, 1.0
    %v850 = vadd.f32 %v744, 1.0
    %v851 = vadd.f32 %v746, 1.0
    %v852 = vadd.f32 %v748, 1.0
    %v853 = vadd.f32 %v750, 1.0
    %v854 = vadd.f32 %v752, 1.0
    %v855 = vadd.f32 %v754, 1.0
    %v856 = vadd.f32 %v756, 1.0
    %v857 = vadd.f32 %v758, 1.0
    %v858 = vadd.f32 %v760, 1.0
    %v859 = vadd.f32 %v762, 1.0
    %v860 = vadd.f32 %v764, 1.0
    %v861 = vadd.f32 %v766, 1.0
    %v862 = vadd.f32 %v768, 1.0
    %v863 = vadd.f32 %v770, 1.0
    %v864 = vadd.f32 %v772, 1.0
    %v865 = vadd.f32 %v774, 1.0
    %v866 = vadd.f32 %v776, 1.0
    %v867 = vadd.f32 %v778, 1.0
    %v868 = vadd.f32 %v780, 1.0
    %v869 = vadd.f32 %v782, 1.0
    %v870 = vadd.f32 %v784, 1.0
    %v871 = vadd.f32 %v786, 1.0
    %v872 = vadd.f32 %v788, 1.0
    %v873 = vadd.f32 %v790, 1.0
    %v874 = vadd.f32 %v792, 1.0
    %v875 = vadd.f32 %v794, 1.0
    %v876 = vadd.f32 %v796, 1.0
    %v877 = vadd.f32 %v798, 1.0
    %v878 = vadd.f32 %v800, 1.0
    %v879 = vadd.f32 %v802, 1.0
    %v880 = vadd.f32 %v804, 1.0
    %v881 = vadd.f32 %v806, 1.0
    %v882 = vadd.f32 %v808, 1.0
    %v883 = vadd.f32 %v810, 1.0
    %v884 = vadd.f32 %v812, 1.0
    %v885 = vadd.f32 %v814, 1.0
    %v886 = vadd.f32 %v816, 1.0
    %v887 = vadd.f32 %v818, 1.0
    %v888 = vadd.f32 %v820, 1.0
    %v889 = vadd.f32 %v822, 1.0
    %v890 = vadd.f32 %v824, 1.0
    %v891 = vadd.f32 %v826, 1.0
    %v892 = vadd.f32 %v828, 1.0
    %v893 = vrcp.pop %v829
    %v894 = vrcp.pop %v830
    %v895 = vrcp.pop %v831
    %v896 = vrcp.pop %v832
    %v897 = vrcp.pop %v833
    %v898 = vrcp.pop %v834
    %v899 = vrcp.pop %v835
    %v900 = vrcp.pop %v836
    %v901 = vrcp.pop %v837
    %v902 = vrcp.pop %v838
    %v903 = vrcp.pop %v839
    %v904 = vrcp.pop %v840
    %v905 = vrcp.pop %v841
    %v906 = vrcp.pop %v842
    %v907 = vrcp.pop %v843
    %v908 = vrcp.pop %v844
    %v909 = vrcp.pop %v845
    %v910 = vrcp.pop %v846
    %v911 = vrcp.pop %v847
    %v912 = vrcp.pop %v848
    %v913 = vrcp.pop %v849
    %v914 = vrcp.pop %v850
    %v915 = vrcp.pop %v851
    %v916 = vrcp.pop %v852
    %v917 = vrcp.pop %v853
    %v918 = vrcp.pop %v854
    %v919 = vrcp.pop %v855
    %v920 = vrcp.pop %v856
    %v921 = vrcp.pop %v857
    %v922 = vrcp.pop %v858
    %v923 = vrcp.pop %v859
    %v924 = vrcp.pop %v860
    %v925 = vrcp.pop %v861
    %v926 = vrcp.pop %v862
    %v927 = vrcp.pop %v863
    %v928 = vrcp.pop %v864
    %v929 = vrcp.pop %v865
    %v930 = vrcp.pop %v866
    %v931 = vrcp.pop %v867
    %v932 = vrcp.pop %v868
    %v933 = vrcp.pop %v869
    %v934 = vrcp.pop %v870
    %v935 = vrcp.pop %v871
    %v936 = vrcp.pop %v872
    %v937 = vrcp.pop %v873
    %v938 = vrcp.pop %v874
    %v939 = vrcp.pop %v875
    %v940 = vrcp.pop %v876
    %v941 = vrcp.pop %v877
    %v942 = vrcp.pop %v878
    %v943 = vrcp.pop %v879
    %v944 = vrcp.pop %v880
    %v945 = vrcp.pop %v881
    %v946 = vrcp.pop %v882
    %v947 = vrcp.pop %v883
    %v948 = vrcp.pop %v884
    %v949 = vrcp.pop %v885
    %v950 = vrcp.pop %v886
    %v951 = vrcp.pop %v887
    %v952 = vrcp.pop %v888
    %v953 = vrcp.pop %v889
    %v954 = vrcp.pop %v890
    %v955 = vrcp.pop %v891
    %v956 = vrcp.pop %v892
    %v957 = vmul.f32 %v383, %v893
    %v958 = vmul.f32 %v386, %v894
    %v959 = vmul.f32 %v391, %v895
    %v960 = vmul.f32 %v394, %v896
    %v961 = vmul.f32 %v399, %v897
    %v962 = vmul.f32 %v402, %v898
    %v963 = vmul.f32 %v407, %v899
    %v964 = vmul.f32 %v410, %v900
    %v965 = vmul.f32 %v415, %v901
    %v966 = vmul.f32 %v418, %v902
    %v967 = vmul.f32 %v423, %v903
    %v968 = vmul.f32 %v426, %v904
    %v969 = vmul.f32 %v431, %v905
    %v970 = vmul.f32 %v434, %v906
    %v971 = vmul.f32 %v439, %v907
    %v972 = vmul.f32 %v442, %v908
    %v973 = vmul.f32 %v447, %v909
    %v974 = vmul.f32 %v450, %v910
    %v975 = vmul.f32 %v455, %v911
    %v976 = vmul.f32 %v458, %v912
    %v977 = vmul.f32 %v463, %v913
    %v978 = vmul.f32 %v466, %v914
    %v979 = vmul.f32 %v471, %v915
    %v980 = vmul.f32 %v474, %v916
    %v981 = vmul.f32 %v479, %v917
    %v982 = vmul.f32 %v482, %v918
    %v983 = vmul.f32 %v487, %v919
    %v984 = vmul.f32 %v490, %v920
    %v985 = vmul.f32 %v495, %v921
    %v986 = vmul.f32 %v498, %v922
    %v987 = vmul.f32 %v503, %v923
    %v988 = vmul.f32 %v506, %v924
    %v989 = vmul.f32 %v511, %v925
    %v990 = vmul.f32 %v514, %v926
    %v991 = vmul.f32 %v519, %v927
    %v992 = vmul.f32 %v522, %v928
    %v993 = vmul.f32 %v527, %v929
    %v994 = vmul.f32 %v530, %v930
    %v995 = vmul.f32 %v535, %v931
    %v996 = vmul.f32 %v538, %v932
    %v997 = vmul.f32 %v543, %v933
    %v998 = vmul.f32 %v546, %v934
    %v999 = vmul.f32 %v551, %v935
    %v1000 = vmul.f32 %v554, %v936
    %v1001 = vmul.f32 %v559, %v937
    %v1002 = vmul.f32 %v562, %v938
    %v1003 = vmul.f32 %v567, %v939
    %v1004 = vmul.f32 %v570, %v940
    %v1005 = vmul.f32 %v575, %v941
    %v1006 = vmul.f32 %v578, %v942
    %v1007 = vmul.f32 %v583, %v943
    %v1008 = vmul.f32 %v586, %v944
    %v1009 = vmul.f32 %v591, %v945
    %v1010 = vmul.f32 %v594, %v946
    %v1011 = vmul.f32 %v599, %v947
    %v1012 = vmul.f32 %v602, %v948
    %v1013 = vmul.f32 %v607, %v949
    %v1014 = vmul.f32 %v610, %v950
    %v1015 = vmul.f32 %v615, %v951
    %v1016 = vmul.f32 %v618, %v952
    %v1017 = vmul.f32 %v623, %v953
    %v1018 = vmul.f32 %v626, %v954
    %v1019 = vmul.f32 %v631, %v955
    %v1020 = vmul.f32 %v634, %v956
    %v1021 = vpack.c.bf16 %v958, %v957
    %v1022 = vpack.c.bf16 %v960, %v959
    %v1023 = vpack.c.bf16 %v962, %v961
    %v1024 = vpack.c.bf16 %v964, %v963
    %v1025 = vpack.c.bf16 %v966, %v965
    %v1026 = vpack.c.bf16 %v968, %v967
    %v1027 = vpack.c.bf16 %v970, %v969
    %v1028 = vpack.c.bf16 %v972, %v971
    %v1029 = vpack.c.bf16 %v974, %v973
    %v1030 = vpack.c.bf16 %v976, %v975
    %v1031 = vpack.c.bf16 %v978, %v977
    %v1032 = vpack.c.bf16 %v980, %v979
    %v1033 = vpack.c.bf16 %v982, %v981
    %v1034 = vpack.c.bf16 %v984, %v983
    %v1035 = vpack.c.bf16 %v986, %v985
    %v1036 = vpack.c.bf16 %v988, %v987
    %v1037 = vpack.c.bf16 %v990, %v989
    %v1038 = vpack.c.bf16 %v992, %v991
    %v1039 = vpack.c.bf16 %v994, %v993
    %v1040 = vpack.c.bf16 %v996, %v995
    %v1041 = vpack.c.bf16 %v998, %v997
    %v1042 = vpack.c.bf16 %v1000, %v999
    %v1043 = vpack.c.bf16 %v1002, %v1001
    %v1044 = vpack.c.bf16 %v1004, %v1003
    %v1045 = vpack.c.bf16 %v1006, %v1005
    %v1046 = vpack.c.bf16 %v1008, %v1007
    %v1047 = vpack.c.bf16 %v1010, %v1009
    %v1048 = vpack.c.bf16 %v1012, %v1011
    %v1049 = vpack.c.bf16 %v1014, %v1013
    %v1050 = vpack.c.bf16 %v1016, %v1015
    %v1051 = vpack.c.bf16 %v1018, %v1017
    %v1052 = vpack.c.bf16 %v1020, %v1019
    %v1053 = vld [vmem:[%s1] sm:$0xf]
    %v1056 = vunpack.c.l.s4 1966171168
    %v1057 = vunpack.c.0.s8 %v1056
    %v1058 = vlaneseq
    %v1059 = vshrl.u32 %v1058, 7
    %v1060 = vsub.s32 %v1057, %v1059
    %v1061 = vrot.slane %v1053, %v1060
    %v1062 = vcombine.high %v1061, %v1061
    %v1064 = vunpack.c.l.s4 1966171168
    %v1065 = vunpack.c.0.s8 %v1064
    %v1066 = vlaneseq
    %v1067 = vshrl.u32 %v1066, 7
    %v1068 = vsub.s32 %v1065, %v1067
    %v1069 = vrot.slane %v1061, %v1068
    %v1071 = vunpack.c.l.s4 1966171168
    %v1072 = vunpack.c.0.s8 %v1071
    %v1073 = vlaneseq
    %v1074 = vshrl.u32 %v1073, 7
    %v1075 = vsub.s32 %v1072, %v1074
    %v1076 = vrot.slane %v1062, %v1075
    %v1077 = vcombine.high %v1069, %v1069
    %v1078 = vcombine.high %v1076, %v1076
    %1083 = vmatprep.subr.bf16.mxu0 0
    %1084 = vmatpush1.bf16.msra.mxu0 %v1021
    %1085 = vmatprep.subr.bf16.mxu0 0
    %1086 = vmatpush1.bf16.msra.mxu0 %v1022
    %1087 = vmatprep.subr.bf16.mxu0 0
    %1088 = vmatpush1.bf16.msra.mxu0 %v1023
    %1089 = vmatprep.subr.bf16.mxu0 0
    %1090 = vmatpush1.bf16.msra.mxu0 %v1024
    %1091 = vmatprep.subr.bf16.mxu0 0
    %1092 = vmatpush1.bf16.msra.mxu0 %v1025
    %1093 = vmatprep.subr.bf16.mxu0 0
    %1094 = vmatpush1.bf16.msra.mxu0 %v1026
    %1095 = vmatprep.subr.bf16.mxu0 0
    %1096 = vmatpush1.bf16.msra.mxu0 %v1027
    %1097 = vmatprep.subr.bf16.mxu0 0
    %1098 = vmatpush1.bf16.msra.mxu0 %v1028
    %1099 = vmatprep.subr.bf16.mxu0 0
    %1100 = vmatpush1.bf16.msra.mxu0 %v1029
    %1101 = vmatprep.subr.bf16.mxu0 0
    %1102 = vmatpush1.bf16.msra.mxu0 %v1030
    %1103 = vmatprep.subr.bf16.mxu0 0
    %1104 = vmatpush1.bf16.msra.mxu0 %v1031
    %1105 = vmatprep.subr.bf16.mxu0 0
    %1106 = vmatpush1.bf16.msra.mxu0 %v1032
    %1107 = vmatprep.subr.bf16.mxu0 0
    %1108 = vmatpush1.bf16.msra.mxu0 %v1033
    %1109 = vmatprep.subr.bf16.mxu0 0
    %1110 = vmatpush1.bf16.msra.mxu0 %v1034
    %1111 = vmatprep.subr.bf16.mxu0 0
    %1112 = vmatpush1.bf16.msra.mxu0 %v1035
    %1113 = vmatprep.subr.bf16.mxu0 0
    %1114 = vmatpush1.bf16.msra.mxu0 %v1036
    %1115 = vmatprep.mubr.bf16.mxu0 %v1076
    %1116 = vmatmul.mubr.bf16.gmra.mrb[0].mxu0 %v1069
    %v1117 = vpop.f32.mrb[0].mxu0
    %v1118 = vadd.f32 0.0, %v1117
    %v1119 = vpop.f32.mrb[0].mxu0
    %v1120 = vpop.f32.mrb[0].mxu0
    %v1121 = vpop.f32.mrb[0].mxu0
    %1122 = vdwg.mxu0
    %1123 = vmatprep.subr.bf16.mxu0 0
    %1124 = vmatpush1.bf16.msra.mxu0 %v1037
    %1125 = vmatprep.subr.bf16.mxu0 0
    %1126 = vmatpush1.bf16.msra.mxu0 %v1038
    %1127 = vmatprep.subr.bf16.mxu0 0
    %1128 = vmatpush1.bf16.msra.mxu0 %v1039
    %1129 = vmatprep.subr.bf16.mxu0 0
    %1130 = vmatpush1.bf16.msra.mxu0 %v1040
    %1131 = vmatprep.subr.bf16.mxu0 0
    %1132 = vmatpush1.bf16.msra.mxu0 %v1041
    %1133 = vmatprep.subr.bf16.mxu0 0
    %1134 = vmatpush1.bf16.msra.mxu0 %v1042
    %1135 = vmatprep.subr.bf16.mxu0 0
    %1136 = vmatpush1.bf16.msra.mxu0 %v1043
    %1137 = vmatprep.subr.bf16.mxu0 0
    %1138 = vmatpush1.bf16.msra.mxu0 %v1044
    %1139 = vmatprep.subr.bf16.mxu0 0
    %1140 = vmatpush1.bf16.msra.mxu0 %v1045
    %1141 = vmatprep.subr.bf16.mxu0 0
    %1142 = vmatpush1.bf16.msra.mxu0 %v1046
    %1143 = vmatprep.subr.bf16.mxu0 0
    %1144 = vmatpush1.bf16.msra.mxu0 %v1047
    %1145 = vmatprep.subr.bf16.mxu0 0
    %1146 = vmatpush1.bf16.msra.mxu0 %v1048
    %1147 = vmatprep.subr.bf16.mxu0 0
    %1148 = vmatpush1.bf16.msra.mxu0 %v1049
    %1149 = vmatprep.subr.bf16.mxu0 0
    %1150 = vmatpush1.bf16.msra.mxu0 %v1050
    %1151 = vmatprep.subr.bf16.mxu0 0
    %1152 = vmatpush1.bf16.msra.mxu0 %v1051
    %1153 = vmatprep.subr.bf16.mxu0 0
    %1154 = vmatpush1.bf16.msra.mxu0 %v1052
    %1155 = vmatprep.mubr.bf16.mxu0 %v1078
    %1156 = vmatmul.mubr.bf16.gmra.mrb[0].mxu0 %v1077
    %v1157 = vpop.f32.mrb[0].mxu0
    %v1158 = vadd.f32 %v1118, %v1157
    %v1159 = vpop.f32.mrb[0].mxu0
    %v1160 = vpop.f32.mrb[0].mxu0
    %v1161 = vpop.f32.mrb[0].mxu0
    %1162 = vdwg.mxu0
    %v1163 = vpack.c.bf16 %v1158, %v1158
    %v1164 = vld [vmem:[%s3] sm:$0xf]
    %v1165 = vld [vmem:[%s3 + $0x4] sm:$0xf]
    %v1166 = vld [vmem:[%s3 + $0x8] sm:$0xf]
    %v1167 = vld [vmem:[%s3 + $0xc] sm:$0xf]
    %v1168 = vld [vmem:[%s4] sm:$0x1]
    %v1170 = vlaneseq
    %v1171 = vshrl.u32 %v1170, 7
    %v1172 = vsub.s32 0, %v1171
    %v1173 = vrot.slane %v1168, %v1172
    %v1179 = vunpack.c.l.b16 %v1164
    %v1180 = vunpack.c.l.b16 %v1165
    %v1181 = vunpack.c.l.b16 %v1166
    %v1182 = vunpack.c.l.b16 %v1167
    %v1183 = vpack.c.b16 %v1180, %v1179
    %v1184 = vpack.c.b16 %v1182, %v1181
    %vm1187 = vcmask 261120
    %v1189 = vsel %vm1187, %v1163, 0
    %1191 = vmatprep.subr.bf16.mxu0 0
    %1192 = vmatpush1.bf16.msra.mxu0 %v1183
    %1193 = vmatprep.subr.bf16.mxu0 0
    %1194 = vmatpush1.bf16.msra.mxu0 %v1184
    %1195 = vmatprep.subr.bf16.mxu0 0
    %1196 = vmatpush1.bf16.msra.mxu0 0
    %1197 = vmatprep.subr.bf16.mxu0 0
    %1198 = vmatpush1.bf16.msra.mxu0 0
    %1199 = vmatprep.subr.bf16.mxu0 0
    %1200 = vmatpush1.bf16.msra.mxu0 0
    %1201 = vmatprep.subr.bf16.mxu0 0
    %1202 = vmatpush1.bf16.msra.mxu0 0
    %1203 = vmatprep.subr.bf16.mxu0 0
    %1204 = vmatpush1.bf16.msra.mxu0 0
    %1205 = vmatprep.subr.bf16.mxu0 0
    %1206 = vmatpush1.bf16.msra.mxu0 0
    %1207 = vmatprep.subr.bf16.mxu0 0
    %1208 = vmatpush1.bf16.msra.mxu0 0
    %1209 = vmatprep.subr.bf16.mxu0 0
    %1210 = vmatpush1.bf16.msra.mxu0 0
    %1211 = vmatprep.subr.bf16.mxu0 0
    %1212 = vmatpush1.bf16.msra.mxu0 0
    %1213 = vmatprep.subr.bf16.mxu0 0
    %1214 = vmatpush1.bf16.msra.mxu0 0
    %1215 = vmatprep.subr.bf16.mxu0 0
    %1216 = vmatpush1.bf16.msra.mxu0 0
    %1217 = vmatprep.subr.bf16.mxu0 0
    %1218 = vmatpush1.bf16.msra.mxu0 0
    %1219 = vmatprep.subr.bf16.mxu0 0
    %1220 = vmatpush1.bf16.msra.mxu0 0
    %1221 = vmatprep.subr.bf16.mxu0 0
    %1222 = vmatpush1.bf16.msra.mxu0 0
    %1223 = vmatprep.mubr.bf16.mxu0 0
    %1224 = vmatmul.mubr.bf16.gmra.mrb[0].mxu0 %v1189
    %v1225 = vpop.f32.mrb[0].mxu0
    %v1226 = vadd.f32 %v1173, %v1225
    %v1227 = vpop.f32.mrb[0].mxu0
    %v1228 = vpop.f32.mrb[0].mxu0
    %v1229 = vpop.f32.mrb[0].mxu0
    %1230 = vdwg.mxu0
    %1231 = vst [vmem:[#allocation2] sm:$0x3] %v1226
    // Predicated region
    $region22: #{tpu_custom_call.1} parent=1 // pred_check
      _
    $region23: #{tpu_custom_call.1} parent=1 // pred_check_branch
      %1233 = sbr.rel (0) target = $region25
    $region24: #{tpu_custom_call.1} parent=1 // pred_region
      %s1235 = ssub.s32 32, 32
      %1236 = vsyncadd [#allocation3], %s1235
      %s1238 = sshll.u32 [#allocation2], 4
      %s1239 = int_to_ptr.vmem [resolvable:$true] %s1238
      %1241 = dma.vmem_to_hbm [thread:$0]  %s1239, 32, %s5, [#allocation3]
    $region25: #{tpu_custom_call.1} parent=1 // pred_fallthru
      _
    // Predicated region
    $region26: #{tpu_custom_call.1} parent=1 // pred_check
      _
    $region27: #{tpu_custom_call.1} parent=1 // pred_check_branch
      %1243 = sbr.rel (0) target = $region29
    $region28: #{tpu_custom_call.1} parent=1 // pred_region
      %1244 = dma.done [#allocation3], 32
    $region29: #{tpu_custom_call.1} parent=1 // pred_fallthru
      _
    %1245 = vsyncpa [#allocation3], 1

</llo_original>
